<compile_context>
chip_gen: v6e
topology: v6e:2x2x1
jax: 0.10.0
libtpu: 0.0.40
codegen_flags: <defaults>
</compile_context>

<pallas_src>
import functools

import numpy as np
import jax
import jax.numpy as jnp
from jax import lax
from jax.experimental import pallas as pl
from jax.experimental.pallas import tpu as pltpu


def vim_block_kernel(kB, S, D, R, N, matmul_dtype,
                     x_ref, ln_ref, w_in_ref, b_in_ref,
                     w_dbc_ref, w_dt_ref, b_dt_ref, a2_ref, bmask_ref, d2_ref,
                     out_ref, da_s, bx_s, h_s):
    f32 = jnp.float32
    x = x_ref[...].astype(f32)                                # (kB*S, D)

    # ---- LayerNorm over features (eps = 1e-5, PyTorch default) ----
    mu = jnp.mean(x, axis=-1, keepdims=True)
    var = jnp.mean((x - mu) ** 2, axis=-1, keepdims=True)
    xn = (x - mu) * lax.rsqrt(var + 1e-5) * ln_ref[0] + ln_ref[1]

    # ---- fused proj + forward/backward conv1d(k=1): ONE MXU pass (bf16 in, f32 acc) ----
    hin = jnp.dot(xn.astype(matmul_dtype), w_in_ref[...],
                  preferred_element_type=f32) + b_in_ref[0]   # (kB*S, 3D)
    z1 = hin[:, 0:D]
    z = z1 * jax.nn.sigmoid(z1)                               # SiLU gate
    xc = jax.nn.softplus(hin[:, D:3 * D])                     # (kB*S, 2D) = [xc_fwd | xc_bwd]

    # ---- fused delta/B/C projection for both directions (block-diag weight) ----
    dbc = jnp.dot(xc.astype(matmul_dtype), w_dbc_ref[...],
                  preferred_element_type=f32)                 # (kB*S, 2R+4N)
    delta = jax.nn.softplus(
        jnp.dot(dbc[:, 0:2 * R].astype(matmul_dtype), w_dt_ref[...],
                preferred_element_type=f32) + b_dt_ref[0])    # (kB*S, 2D)
    Bm = dbc[:, 2 * R:2 * R + 2 * N]                          # (kB*S, 2N)
    Cm = dbc[:, 2 * R + 2 * N:2 * R + 4 * N]                  # (kB*S, 2N)

    A2 = a2_ref[...]                                          # (2N, 2D) = -exp(A_log), D on lanes
    bmask = bmask_ref[...]                                    # (2N, 2D) 0/1 cross-direction mask
    dxc = delta * xc                                          # (kB*S, 2D)

    # ---- bulk precompute, OFF the serial path (EUP exp + VPU outer products) ----
    # dA[t], BX[t] laid out (2N sublanes, 2D lanes); one slab per folded batch element.
    for kb in range(kB):                                      # static, small
        sl = slice(kb * S, (kb + 1) * S)
        da_s[:, kb:kb + 1] = jnp.exp(delta[sl][:, None, :] * A2[None])[:, None]
        bx_s[:, kb:kb + 1] = ((dxc[sl][:, None, :] * Bm[sl][:, :, None])
                              * bmask[None])[:, None]

    # ---- joint selective scan: loop body is one FMA + one scratch store ----
    def step(t, h):
        h = da_s[t] * h + bx_s[t]                             # (kB, 2N, 2D)
        h_s[t] = h
        return h

    lax.fori_loop(0, S, step, jnp.zeros((kB, 2 * N, 2 * D), f32), unroll=8)

    # ---- deferred C contraction: one vectorized sublane-reduce pass ----
    hist = h_s[...]                                           # (S, kB, 2N, 2D)
    ys = []
    for kb in range(kB):
        sl = slice(kb * S, (kb + 1) * S)
        ys.append(jnp.sum(hist[:, kb] * Cm[sl][:, :, None], axis=1))   # (S, 2D)
    Y = (jnp.concatenate(ys, axis=0) if kB > 1 else ys[0]) + xc * d2_ref[0]  # (kB*S, 2D)

    y = (Y[:, 0:D] + Y[:, D:2 * D]) * z                       # x1*z + x2*z
    out_ref[...] = (x + y).astype(out_ref.dtype)              # + skip


def vim_block(x, p, *, matmul_dtype=jnp.bfloat16, batch_per_step=1):
    Bn, S, D = x.shape
    R = p["wdt"].shape[0]
    N = p["wB"].shape[1]
    f32 = jnp.float32
    kB = batch_per_step
    assert Bn % kB == 0

    # ---- wrapper-side parameter packing (free layout plumbing, done once) ----
    ln2 = jnp.concatenate([p["ln_w"], p["ln_b"]], axis=0)                 # (2, D)
    w_in = jnp.concatenate([p["wproj"], p["wf"], p["wb"]],
                           axis=1).astype(matmul_dtype)                   # (D, 3D)
    b_in = jnp.concatenate([p["bproj"], p["bf"], p["bb"]], axis=1)        # (1, 3D)

    zdr = jnp.zeros((D, R), f32)
    zdn = jnp.zeros((D, N), f32)
    w_dbc = jnp.concatenate([
        jnp.concatenate([p["wdelta"], zdr, p["wB"], zdn, p["wC"], zdn], axis=1),
        jnp.concatenate([zdr, p["wdelta"], zdn, p["wB"], zdn, p["wC"]], axis=1),
    ], axis=0).astype(matmul_dtype)                                       # (2D, 2R+4N)
    zrd = jnp.zeros((R, D), f32)
    w_dt = jnp.concatenate([
        jnp.concatenate([p["wdt"], zrd], axis=1),
        jnp.concatenate([zrd, p["wdt"]], axis=1),
    ], axis=0).astype(matmul_dtype)                                       # (2R, 2D)
    b_dt = jnp.concatenate([p["bdt"], p["bdt"]], axis=1)                  # (1, 2D)

    # -exp(A_log), transposed so channels sit on lanes; tiled for both directions.
    a2 = jnp.tile(-jnp.exp(p["a_log"]).T, (2, 2))                         # (2N, 2D)
    # Static direction mask: fwd uses sublanes [0,N) x lanes [0,D), bwd the rest.
    rr = np.arange(2 * N)[:, None]
    cc = np.arange(2 * D)[None, :]
    bmask = jnp.asarray(((rr < N) == (cc < D)).astype(np.float32))        # (2N, 2D)
    d2 = jnp.concatenate([p["d_param"], p["d_param"]], axis=1)            # (1, 2D)

    params = [ln2, w_in, b_in, w_dbc, w_dt, b_dt, a2, bmask, d2]

    xf = x.reshape(Bn * S, D)                                             # (B*S, D) slab
    rows = kB * S

    in_specs = [pl.BlockSpec((rows, D), lambda b: (b, 0))]
    in_specs += [pl.BlockSpec(q.shape, lambda b: (0, 0)) for q in params]

    kernel = functools.partial(vim_block_kernel, kB, S, D, R, N, matmul_dtype)
    out = pl.pallas_call(
        kernel,
        out_shape=jax.ShapeDtypeStruct((Bn * S, D), x.dtype),
        grid_spec=pltpu.PrefetchScalarGridSpec(
            num_scalar_prefetch=0,
            grid=(Bn // kB,),
            in_specs=in_specs,
            out_specs=pl.BlockSpec((rows, D), lambda b: (b, 0)),
            scratch_shapes=[
                pltpu.VMEM((S, kB, 2 * N, 2 * D), f32),   # dA  = exp(delta*A)
                pltpu.VMEM((S, kB, 2 * N, 2 * D), f32),   # BX  = (delta*x)*B * mask
                pltpu.VMEM((S, kB, 2 * N, 2 * D), f32),   # h_t history (deferred C)
            ],
        ),
        compiler_params=pltpu.CompilerParams(
            dimension_semantics=("parallel",)),
    )(xf, *params)
    return out.reshape(Bn, S, D)


def ref_block(x, p):
    """Pure-JAX reference of the PyTorch forward pass (for correctness check)."""
    ln_w, ln_b = p["ln_w"][0], p["ln_b"][0]
    mu = x.mean(-1, keepdims=True)
    var = ((x - mu) ** 2).mean(-1, keepdims=True)
    xn = (x - mu) / jnp.sqrt(var + 1e-5) * ln_w + ln_b
    z1 = xn @ p["wproj"] + p["bproj"][0]
    z = z1 * jax.nn.sigmoid(z1)
    A = -jnp.exp(p["a_log"])
    Dp = p["d_param"][0]

    # NOTE: the 'backward' branch of the PyTorch module does NOT reverse time;
    # it only uses a different conv.  The reference mirrors that.
    def ssm_dir(wc, bc):
        xc = jax.nn.softplus(xn @ wc + bc[0])
        delta = jax.nn.softplus((xc @ p["wdelta"]) @ p["wdt"] + p["bdt"][0])
        Bm = xc @ p["wB"]
        Cm = xc @ p["wC"]
        deltaA = jnp.exp(delta[..., None] * A)                 # (B,S,D,N)
        BX = (delta * xc)[..., None] * Bm[:, :, None, :]       # (B,S,D,N)

        def step(h, inp):
            dA_t, bx_t, c_t, x_t = inp
            h = dA_t * h + bx_t
            y = (h * c_t[:, None, :]).sum(-1) + Dp * x_t
            return h, y

        Bsz = x.shape[0]
        h0 = jnp.zeros((Bsz, x.shape[-1], A.shape[-1]), jnp.float32)
        inputs = (jnp.moveaxis(deltaA, 1, 0), jnp.moveaxis(BX, 1, 0),
                  jnp.moveaxis(Cm, 1, 0), jnp.moveaxis(xc, 1, 0))
        _, ys = lax.scan(step, h0, inputs)
        return jnp.moveaxis(ys, 0, 1)

    x1 = ssm_dir(p["wf"], p["bf"])
    x2 = ssm_dir(p["wb"], p["bb"])
    return x1 * z + x2 * z + x


if __name__ == "__main__":
    # Small shapes consistent with the module: dim=32, dt_rank=8,
    # dim_inner=dim=32, d_state=8, batch=2, seq=8.
    Bsz, S, D = 2, 8, 32
    R, N = 8, 8

    key = jax.random.PRNGKey(0)
    ks = jax.random.split(key, 12)

    def uinit(k, shape, fan_in):
        bound = 1.0 / np.sqrt(fan_in)
        return jax.random.uniform(k, shape, jnp.float32, -bound, bound)

    params = {
        "ln_w": jnp.ones((1, D), jnp.float32),
        "ln_b": jnp.zeros((1, D), jnp.float32),
        "wproj": uinit(ks[0], (D, D), D),
        "bproj": uinit(ks[1], (1, D), D),
        "wf": uinit(ks[2], (D, D), D),
        "bf": uinit(ks[3], (1, D), D),
        "wb": uinit(ks[4], (D, D), D),
        "bb": uinit(ks[5], (1, D), D),
        "wdelta": uinit(ks[6], (D, R), D),
        "wB": uinit(ks[7], (D, N), D),
        "wC": uinit(ks[8], (D, N), D),
        "wdt": uinit(ks[9], (R, D), R),
        "bdt": uinit(ks[10], (1, D), R),
        # SSM __init__: A_log = log(arange(1..d_state).repeat(dim_inner, 1)), D = ones
        "a_log": jnp.log(jnp.tile(jnp.arange(1, N + 1, dtype=jnp.float32)[None, :],
                                  (D, 1))),
        "d_param": jnp.ones((1, D), jnp.float32),
    }

    x = jax.random.normal(ks[11], (Bsz, S, D), jnp.float32)
    ref = ref_block(x, params)

    # Primary config: bf16 MXU operands, 1 batch element / grid step (grid=(2,)
    # keeps both v7x TensorCores busy).  Loose tolerance vs the f32 reference.
    out = jax.block_until_ready(
        vim_block(x, params, matmul_dtype=jnp.bfloat16, batch_per_step=1))
    assert out.shape == (Bsz, S, D)
    np.testing.assert_allclose(np.asarray(out), np.asarray(ref), rtol=5e-2, atol=5e-2)

    # Exact-semantics check: f32 MXU operands, tight tolerance.
    out_f32 = jax.block_until_ready(
        vim_block(x, params, matmul_dtype=jnp.float32, batch_per_step=1))
    np.testing.assert_allclose(np.asarray(out_f32), np.asarray(ref), rtol=2e-3, atol=2e-3)

    # Batch-folding path (kB=2 elements per grid step, grid=(1,)).
    out_fold = jax.block_until_ready(
        vim_block(x, params, matmul_dtype=jnp.float32, batch_per_step=2))
    np.testing.assert_allclose(np.asarray(out_fold), np.asarray(ref), rtol=2e-3, atol=2e-3)

    print("KERNEL_OK")
</pallas_src>

<mosaic_0001>
module attributes {stable_mosaic.version = 11 : i64} {
  func.func @vim_block_kernel(%arg0: i32, %arg1: memref<8x32xf32, #tpu.memory_space<vmem>>, %arg2: memref<2x32xf32, #tpu.memory_space<vmem>>, %arg3: memref<32x96xbf16, #tpu.memory_space<vmem>>, %arg4: memref<1x96xf32, #tpu.memory_space<vmem>>, %arg5: memref<64x48xbf16, #tpu.memory_space<vmem>>, %arg6: memref<16x64xbf16, #tpu.memory_space<vmem>>, %arg7: memref<1x64xf32, #tpu.memory_space<vmem>>, %arg8: memref<16x64xf32, #tpu.memory_space<vmem>>, %arg9: memref<16x64xf32, #tpu.memory_space<vmem>>, %arg10: memref<1x64xf32, #tpu.memory_space<vmem>>, %arg11: memref<8x32xf32, #tpu.memory_space<vmem>>, %arg12: memref<8x1x16x64xf32, #tpu.memory_space<vmem>>, %arg13: memref<8x1x16x64xf32, #tpu.memory_space<vmem>>, %arg14: memref<8x1x16x64xf32, #tpu.memory_space<vmem>>) attributes {dimension_semantics = [#tpu.dimension_semantics<parallel>], iteration_bounds = array<i64: 2>, scalar_prefetch = 0 : i64, scratch_operands = 3 : i64, tpu.core_type = #tpu.core_type<tc>, window_params = [{transform_indices = @transform_0, window_bounds = array<i64: 8, 32>}, {pipeline_mode = #tpu.pipeline_mode<synchronous>, transform_indices = @transform_1, window_bounds = array<i64: 2, 32>}, {pipeline_mode = #tpu.pipeline_mode<synchronous>, transform_indices = @transform_2, window_bounds = array<i64: 32, 96>}, {pipeline_mode = #tpu.pipeline_mode<synchronous>, transform_indices = @transform_3, window_bounds = array<i64: 1, 96>}, {pipeline_mode = #tpu.pipeline_mode<synchronous>, transform_indices = @transform_4, window_bounds = array<i64: 64, 48>}, {pipeline_mode = #tpu.pipeline_mode<synchronous>, transform_indices = @transform_5, window_bounds = array<i64: 16, 64>}, {pipeline_mode = #tpu.pipeline_mode<synchronous>, transform_indices = @transform_6, window_bounds = array<i64: 1, 64>}, {pipeline_mode = #tpu.pipeline_mode<synchronous>, transform_indices = @transform_7, window_bounds = array<i64: 16, 64>}, {pipeline_mode = #tpu.pipeline_mode<synchronous>, transform_indices = @transform_8, window_bounds = array<i64: 16, 64>}, {pipeline_mode = #tpu.pipeline_mode<synchronous>, transform_indices = @transform_9, window_bounds = array<i64: 1, 64>}, {transform_indices = @transform_10, window_bounds = array<i64: 8, 32>}]} {
    %c0 = arith.constant 0 : index
    %c0_0 = arith.constant 0 : index
    %0 = vector.load %arg1[%c0, %c0_0] : memref<8x32xf32, #tpu.memory_space<vmem>>, vector<8x32xf32>
    %cst = arith.constant dense<0.000000e+00> : vector<8xf32>
    %1 = vector.multi_reduction <add>, %0, %cst [1] : vector<8x32xf32> to vector<8xf32>
    %2 = vector.shape_cast %1 : vector<8xf32> to vector<8x1xf32>
    %cst_1 = arith.constant 3.200000e+01 : f32
    %3 = vector.broadcast %cst_1 : f32 to vector<8x1xf32>
    %4 = arith.divf %2, %3 : vector<8x1xf32>
    %5 = vector.broadcast %4 : vector<8x1xf32> to vector<8x32xf32>
    %6 = arith.subf %0, %5 : vector<8x32xf32>
    %7 = arith.mulf %6, %6 : vector<8x32xf32>
    %cst_2 = arith.constant dense<0.000000e+00> : vector<8xf32>
    %8 = vector.multi_reduction <add>, %7, %cst_2 [1] : vector<8x32xf32> to vector<8xf32>
    %9 = vector.shape_cast %8 : vector<8xf32> to vector<8x1xf32>
    %cst_3 = arith.constant 3.200000e+01 : f32
    %10 = vector.broadcast %cst_3 : f32 to vector<8x1xf32>
    %11 = arith.divf %9, %10 : vector<8x1xf32>
    %12 = vector.broadcast %4 : vector<8x1xf32> to vector<8x32xf32>
    %13 = arith.subf %0, %12 : vector<8x32xf32>
    %cst_4 = arith.constant 9.99999974E-6 : f32
    %14 = vector.broadcast %cst_4 : f32 to vector<8x1xf32>
    %15 = arith.addf %11, %14 : vector<8x1xf32>
    %16 = math.rsqrt %15 : vector<8x1xf32>
    %17 = vector.broadcast %16 : vector<8x1xf32> to vector<8x32xf32>
    %18 = arith.mulf %13, %17 : vector<8x32xf32>
    %c0_5 = arith.constant 0 : index
    %c0_6 = arith.constant 0 : index
    %19 = vector.load %arg2[%c0_5, %c0_6] : memref<2x32xf32, #tpu.memory_space<vmem>>, vector<1x32xf32>
    %20 = vector.shape_cast %19 : vector<1x32xf32> to vector<32xf32>
    %21 = vector.shape_cast %20 : vector<32xf32> to vector<1x32xf32>
    %22 = vector.broadcast %21 : vector<1x32xf32> to vector<8x32xf32>
    %23 = arith.mulf %18, %22 : vector<8x32xf32>
    %c1 = arith.constant 1 : index
    %c0_7 = arith.constant 0 : index
    %24 = vector.load %arg2[%c1, %c0_7] : memref<2x32xf32, #tpu.memory_space<vmem>>, vector<1x32xf32>
    %25 = vector.shape_cast %24 : vector<1x32xf32> to vector<32xf32>
    %26 = vector.shape_cast %25 : vector<32xf32> to vector<1x32xf32>
    %27 = vector.broadcast %26 : vector<1x32xf32> to vector<8x32xf32>
    %28 = arith.addf %23, %27 : vector<8x32xf32>
    %29 = arith.truncf %28 : vector<8x32xf32> to vector<8x32xbf16>
    %c0_8 = arith.constant 0 : index
    %c0_9 = arith.constant 0 : index
    %30 = vector.load %arg3[%c0_8, %c0_9] : memref<32x96xbf16, #tpu.memory_space<vmem>>, vector<32x96xbf16>
    %cst_10 = arith.constant dense<0.000000e+00> : vector<8x96xf32>
    %31 = tpu.matmul %29, %30, %cst_10 {dimension_numbers = #tpu.dot_dimension_numbers<[1], [0], [0], [1], [0, 0, 1, 1], [], []>} : vector<8x32xbf16>, vector<32x96xbf16>, vector<8x96xf32> -> vector<8x96xf32>
    %c0_11 = arith.constant 0 : index
    %c0_12 = arith.constant 0 : index
    %32 = vector.load %arg4[%c0_11, %c0_12] : memref<1x96xf32, #tpu.memory_space<vmem>>, vector<1x96xf32>
    %33 = vector.shape_cast %32 : vector<1x96xf32> to vector<96xf32>
    %34 = vector.shape_cast %33 : vector<96xf32> to vector<1x96xf32>
    %35 = vector.broadcast %34 : vector<1x96xf32> to vector<8x96xf32>
    %36 = arith.addf %31, %35 : vector<8x96xf32>
    %37 = vector.extract_strided_slice %36 {offsets = [0, 0], sizes = [8, 32], strides = [1, 1]} : vector<8x96xf32> to vector<8x32xf32>
    %38 = arith.negf %37 : vector<8x32xf32>
    %39 = math.exp %38 : vector<8x32xf32>
    %cst_13 = arith.constant 1.000000e+00 : f32
    %40 = vector.broadcast %cst_13 : f32 to vector<8x32xf32>
    %41 = arith.addf %40, %39 : vector<8x32xf32>
    %42 = arith.divf %40, %41 : vector<8x32xf32>
    %43 = arith.mulf %37, %42 : vector<8x32xf32>
    %44 = vector.extract_strided_slice %36 {offsets = [0, 32], sizes = [8, 64], strides = [1, 1]} : vector<8x96xf32> to vector<8x64xf32>
    %cst_14 = arith.constant 0.000000e+00 : f32
    %45 = vector.broadcast %cst_14 : f32 to vector<8x64xf32>
    %46 = arith.maximumf %44, %45 : vector<8x64xf32>
    %47 = vector.broadcast %cst_14 : f32 to vector<8x64xf32>
    %48 = arith.subf %44, %47 : vector<8x64xf32>
    %49 = arith.cmpf one, %48, %48 : vector<8x64xf32>
    %50 = vector.broadcast %cst_14 : f32 to vector<8x64xf32>
    %51 = arith.addf %44, %50 : vector<8x64xf32>
    %52 = math.absf %48 : vector<8x64xf32>
    %cst_15 = arith.constant 0.000000e+00 : f32
    %53 = vector.broadcast %cst_15 : f32 to vector<8x64xf32>
    %54 = arith.subf %53, %52 : vector<8x64xf32>
    %55 = math.exp %54 : vector<8x64xf32>
    %56 = math.log1p %55 : vector<8x64xf32>
    %57 = arith.addf %46, %56 : vector<8x64xf32>
    %58 = arith.select %49, %51, %57 : vector<8x64xi1>, vector<8x64xf32>
    %59 = arith.truncf %58 : vector<8x64xf32> to vector<8x64xbf16>
    %c0_16 = arith.constant 0 : index
    %c0_17 = arith.constant 0 : index
    %60 = vector.load %arg5[%c0_16, %c0_17] : memref<64x48xbf16, #tpu.memory_space<vmem>>, vector<64x48xbf16>
    %cst_18 = arith.constant dense<0.000000e+00> : vector<8x48xf32>
    %61 = tpu.matmul %59, %60, %cst_18 {dimension_numbers = #tpu.dot_dimension_numbers<[1], [0], [0], [1], [0, 0, 1, 1], [], []>} : vector<8x64xbf16>, vector<64x48xbf16>, vector<8x48xf32> -> vector<8x48xf32>
    %62 = vector.extract_strided_slice %61 {offsets = [0, 0], sizes = [8, 16], strides = [1, 1]} : vector<8x48xf32> to vector<8x16xf32>
    %63 = arith.truncf %62 : vector<8x16xf32> to vector<8x16xbf16>
    %c0_19 = arith.constant 0 : index
    %c0_20 = arith.constant 0 : index
    %64 = vector.load %arg6[%c0_19, %c0_20] : memref<16x64xbf16, #tpu.memory_space<vmem>>, vector<16x64xbf16>
    %cst_21 = arith.constant dense<0.000000e+00> : vector<8x64xf32>
    %65 = tpu.matmul %63, %64, %cst_21 {dimension_numbers = #tpu.dot_dimension_numbers<[1], [0], [0], [1], [0, 0, 1, 1], [], []>} : vector<8x16xbf16>, vector<16x64xbf16>, vector<8x64xf32> -> vector<8x64xf32>
    %c0_22 = arith.constant 0 : index
    %c0_23 = arith.constant 0 : index
    %66 = vector.load %arg7[%c0_22, %c0_23] : memref<1x64xf32, #tpu.memory_space<vmem>>, vector<1x64xf32>
    %67 = vector.shape_cast %66 : vector<1x64xf32> to vector<64xf32>
    %68 = vector.shape_cast %67 : vector<64xf32> to vector<1x64xf32>
    %69 = vector.broadcast %68 : vector<1x64xf32> to vector<8x64xf32>
    %70 = arith.addf %65, %69 : vector<8x64xf32>
    %cst_24 = arith.constant 0.000000e+00 : f32
    %71 = vector.broadcast %cst_24 : f32 to vector<8x64xf32>
    %72 = arith.maximumf %70, %71 : vector<8x64xf32>
    %73 = vector.broadcast %cst_24 : f32 to vector<8x64xf32>
    %74 = arith.subf %70, %73 : vector<8x64xf32>
    %75 = arith.cmpf one, %74, %74 : vector<8x64xf32>
    %76 = vector.broadcast %cst_24 : f32 to vector<8x64xf32>
    %77 = arith.addf %70, %76 : vector<8x64xf32>
    %78 = math.absf %74 : vector<8x64xf32>
    %cst_25 = arith.constant 0.000000e+00 : f32
    %79 = vector.broadcast %cst_25 : f32 to vector<8x64xf32>
    %80 = arith.subf %79, %78 : vector<8x64xf32>
    %81 = math.exp %80 : vector<8x64xf32>
    %82 = math.log1p %81 : vector<8x64xf32>
    %83 = arith.addf %72, %82 : vector<8x64xf32>
    %84 = arith.select %75, %77, %83 : vector<8x64xi1>, vector<8x64xf32>
    %85 = vector.extract_strided_slice %61 {offsets = [0, 16], sizes = [8, 16], strides = [1, 1]} : vector<8x48xf32> to vector<8x16xf32>
    %86 = vector.extract_strided_slice %61 {offsets = [0, 32], sizes = [8, 16], strides = [1, 1]} : vector<8x48xf32> to vector<8x16xf32>
    %c0_26 = arith.constant 0 : index
    %c0_27 = arith.constant 0 : index
    %87 = vector.load %arg8[%c0_26, %c0_27] : memref<16x64xf32, #tpu.memory_space<vmem>>, vector<16x64xf32>
    %c0_28 = arith.constant 0 : index
    %c0_29 = arith.constant 0 : index
    %88 = vector.load %arg9[%c0_28, %c0_29] : memref<16x64xf32, #tpu.memory_space<vmem>>, vector<16x64xf32>
    %89 = arith.mulf %84, %58 : vector<8x64xf32>
    %90 = vector.shape_cast %84 : vector<8x64xf32> to vector<8x1x64xf32>
    %91 = vector.shape_cast %87 : vector<16x64xf32> to vector<1x16x64xf32>
    %92 = vector.broadcast %90 : vector<8x1x64xf32> to vector<8x16x64xf32>
    %93 = vector.broadcast %91 : vector<1x16x64xf32> to vector<8x16x64xf32>
    %94 = arith.mulf %92, %93 : vector<8x16x64xf32>
    %95 = math.exp %94 : vector<8x16x64xf32>
    %96 = vector.shape_cast %95 : vector<8x16x64xf32> to vector<8x1x16x64xf32>
    %c0_30 = arith.constant 0 : index
    %c0_31 = arith.constant 0 : index
    %c0_32 = arith.constant 0 : index
    %c0_33 = arith.constant 0 : index
    %97 = vector.load %arg12[%c0_30, %c0_31, %c0_32, %c0_33] : memref<8x1x16x64xf32, #tpu.memory_space<vmem>>, vector<8x1x16x64xf32>
    tpu.vector_store %arg12[%c0_30, %c0_31, %c0_32, %c0_33], %96 {strides = array<i32>} : memref<8x1x16x64xf32, #tpu.memory_space<vmem>>, vector<8x1x16x64xf32>,
    %98 = vector.shape_cast %89 : vector<8x64xf32> to vector<8x1x64xf32>
    %99 = vector.shape_cast %85 : vector<8x16xf32> to vector<8x16x1xf32>
    %100 = vector.broadcast %98 : vector<8x1x64xf32> to vector<8x16x64xf32>
    %101 = vector.broadcast %99 : vector<8x16x1xf32> to vector<8x16x64xf32>
    %102 = arith.mulf %100, %101 : vector<8x16x64xf32>
    %103 = vector.shape_cast %88 : vector<16x64xf32> to vector<1x16x64xf32>
    %104 = vector.broadcast %103 : vector<1x16x64xf32> to vector<8x16x64xf32>
    %105 = arith.mulf %102, %104 : vector<8x16x64xf32>
    %106 = vector.shape_cast %105 : vector<8x16x64xf32> to vector<8x1x16x64xf32>
    %c0_34 = arith.constant 0 : index
    %c0_35 = arith.constant 0 : index
    %c0_36 = arith.constant 0 : index
    %c0_37 = arith.constant 0 : index
    %107 = vector.load %arg13[%c0_34, %c0_35, %c0_36, %c0_37] : memref<8x1x16x64xf32, #tpu.memory_space<vmem>>, vector<8x1x16x64xf32>
    tpu.vector_store %arg13[%c0_34, %c0_35, %c0_36, %c0_37], %106 {strides = array<i32>} : memref<8x1x16x64xf32, #tpu.memory_space<vmem>>, vector<8x1x16x64xf32>,
    %cst_38 = arith.constant 0.000000e+00 : f32
    %108 = vector.broadcast %cst_38 : f32 to vector<1x16x64xf32>
    %c0_i32 = arith.constant 0 : i32
    %109 = arith.index_cast %c0_i32 : i32 to index
    %c0_39 = arith.constant 0 : index
    %c0_40 = arith.constant 0 : index
    %c0_41 = arith.constant 0 : index
    %110 = vector.load %arg12[%109, %c0_39, %c0_40, %c0_41] : memref<8x1x16x64xf32, #tpu.memory_space<vmem>>, vector<1x1x16x64xf32>
    %111 = vector.shape_cast %110 : vector<1x1x16x64xf32> to vector<1x16x64xf32>
    %112 = arith.mulf %111, %108 : vector<1x16x64xf32>
    %113 = arith.index_cast %c0_i32 : i32 to index
    %c0_42 = arith.constant 0 : index
    %c0_43 = arith.constant 0 : index
    %c0_44 = arith.constant 0 : index
    %114 = vector.load %arg13[%113, %c0_42, %c0_43, %c0_44] : memref<8x1x16x64xf32, #tpu.memory_space<vmem>>, vector<1x1x16x64xf32>
    %115 = vector.shape_cast %114 : vector<1x1x16x64xf32> to vector<1x16x64xf32>
    %116 = arith.addf %112, %115 : vector<1x16x64xf32>
    %117 = arith.index_cast %c0_i32 : i32 to index
    %c0_45 = arith.constant 0 : index
    %c0_46 = arith.constant 0 : index
    %c0_47 = arith.constant 0 : index
    %118 = vector.load %arg14[%117, %c0_45, %c0_46, %c0_47] : memref<8x1x16x64xf32, #tpu.memory_space<vmem>>, vector<1x1x16x64xf32>
    %119 = vector.shape_cast %118 : vector<1x1x16x64xf32> to vector<1x16x64xf32>
    %120 = vector.shape_cast %116 : vector<1x16x64xf32> to vector<1x1x16x64xf32>
    tpu.vector_store %arg14[%117, %c0_45, %c0_46, %c0_47], %120 {strides = array<i32>} : memref<8x1x16x64xf32, #tpu.memory_space<vmem>>, vector<1x1x16x64xf32>,
    %c1_i32 = arith.constant 1 : i32
    %121 = arith.index_cast %c1_i32 : i32 to index
    %c0_48 = arith.constant 0 : index
    %c0_49 = arith.constant 0 : index
    %c0_50 = arith.constant 0 : index
    %122 = vector.load %arg12[%121, %c0_48, %c0_49, %c0_50] : memref<8x1x16x64xf32, #tpu.memory_space<vmem>>, vector<1x1x16x64xf32>
    %123 = vector.shape_cast %122 : vector<1x1x16x64xf32> to vector<1x16x64xf32>
    %124 = arith.mulf %123, %116 : vector<1x16x64xf32>
    %125 = arith.index_cast %c1_i32 : i32 to index
    %c0_51 = arith.constant 0 : index
    %c0_52 = arith.constant 0 : index
    %c0_53 = arith.constant 0 : index
    %126 = vector.load %arg13[%125, %c0_51, %c0_52, %c0_53] : memref<8x1x16x64xf32, #tpu.memory_space<vmem>>, vector<1x1x16x64xf32>
    %127 = vector.shape_cast %126 : vector<1x1x16x64xf32> to vector<1x16x64xf32>
    %128 = arith.addf %124, %127 : vector<1x16x64xf32>
    %129 = arith.index_cast %c1_i32 : i32 to index
    %c0_54 = arith.constant 0 : index
    %c0_55 = arith.constant 0 : index
    %c0_56 = arith.constant 0 : index
    %130 = vector.load %arg14[%129, %c0_54, %c0_55, %c0_56] : memref<8x1x16x64xf32, #tpu.memory_space<vmem>>, vector<1x1x16x64xf32>
    %131 = vector.shape_cast %130 : vector<1x1x16x64xf32> to vector<1x16x64xf32>
    %132 = vector.shape_cast %128 : vector<1x16x64xf32> to vector<1x1x16x64xf32>
    tpu.vector_store %arg14[%129, %c0_54, %c0_55, %c0_56], %132 {strides = array<i32>} : memref<8x1x16x64xf32, #tpu.memory_space<vmem>>, vector<1x1x16x64xf32>,
    %c2_i32 = arith.constant 2 : i32
    %133 = arith.index_cast %c2_i32 : i32 to index
    %c0_57 = arith.constant 0 : index
    %c0_58 = arith.constant 0 : index
    %c0_59 = arith.constant 0 : index
    %134 = vector.load %arg12[%133, %c0_57, %c0_58, %c0_59] : memref<8x1x16x64xf32, #tpu.memory_space<vmem>>, vector<1x1x16x64xf32>
    %135 = vector.shape_cast %134 : vector<1x1x16x64xf32> to vector<1x16x64xf32>
    %136 = arith.mulf %135, %128 : vector<1x16x64xf32>
    %137 = arith.index_cast %c2_i32 : i32 to index
    %c0_60 = arith.constant 0 : index
    %c0_61 = arith.constant 0 : index
    %c0_62 = arith.constant 0 : index
    %138 = vector.load %arg13[%137, %c0_60, %c0_61, %c0_62] : memref<8x1x16x64xf32, #tpu.memory_space<vmem>>, vector<1x1x16x64xf32>
    %139 = vector.shape_cast %138 : vector<1x1x16x64xf32> to vector<1x16x64xf32>
    %140 = arith.addf %136, %139 : vector<1x16x64xf32>
    %141 = arith.index_cast %c2_i32 : i32 to index
    %c0_63 = arith.constant 0 : index
    %c0_64 = arith.constant 0 : index
    %c0_65 = arith.constant 0 : index
    %142 = vector.load %arg14[%141, %c0_63, %c0_64, %c0_65] : memref<8x1x16x64xf32, #tpu.memory_space<vmem>>, vector<1x1x16x64xf32>
    %143 = vector.shape_cast %142 : vector<1x1x16x64xf32> to vector<1x16x64xf32>
    %144 = vector.shape_cast %140 : vector<1x16x64xf32> to vector<1x1x16x64xf32>
    tpu.vector_store %arg14[%141, %c0_63, %c0_64, %c0_65], %144 {strides = array<i32>} : memref<8x1x16x64xf32, #tpu.memory_space<vmem>>, vector<1x1x16x64xf32>,
    %c3_i32 = arith.constant 3 : i32
    %145 = arith.index_cast %c3_i32 : i32 to index
    %c0_66 = arith.constant 0 : index
    %c0_67 = arith.constant 0 : index
    %c0_68 = arith.constant 0 : index
    %146 = vector.load %arg12[%145, %c0_66, %c0_67, %c0_68] : memref<8x1x16x64xf32, #tpu.memory_space<vmem>>, vector<1x1x16x64xf32>
    %147 = vector.shape_cast %146 : vector<1x1x16x64xf32> to vector<1x16x64xf32>
    %148 = arith.mulf %147, %140 : vector<1x16x64xf32>
    %149 = arith.index_cast %c3_i32 : i32 to index
    %c0_69 = arith.constant 0 : index
    %c0_70 = arith.constant 0 : index
    %c0_71 = arith.constant 0 : index
    %150 = vector.load %arg13[%149, %c0_69, %c0_70, %c0_71] : memref<8x1x16x64xf32, #tpu.memory_space<vmem>>, vector<1x1x16x64xf32>
    %151 = vector.shape_cast %150 : vector<1x1x16x64xf32> to vector<1x16x64xf32>
    %152 = arith.addf %148, %151 : vector<1x16x64xf32>
    %153 = arith.index_cast %c3_i32 : i32 to index
    %c0_72 = arith.constant 0 : index
    %c0_73 = arith.constant 0 : index
    %c0_74 = arith.constant 0 : index
    %154 = vector.load %arg14[%153, %c0_72, %c0_73, %c0_74] : memref<8x1x16x64xf32, #tpu.memory_space<vmem>>, vector<1x1x16x64xf32>
    %155 = vector.shape_cast %154 : vector<1x1x16x64xf32> to vector<1x16x64xf32>
    %156 = vector.shape_cast %152 : vector<1x16x64xf32> to vector<1x1x16x64xf32>
    tpu.vector_store %arg14[%153, %c0_72, %c0_73, %c0_74], %156 {strides = array<i32>} : memref<8x1x16x64xf32, #tpu.memory_space<vmem>>, vector<1x1x16x64xf32>,
    %c4_i32 = arith.constant 4 : i32
    %157 = arith.index_cast %c4_i32 : i32 to index
    %c0_75 = arith.constant 0 : index
    %c0_76 = arith.constant 0 : index
    %c0_77 = arith.constant 0 : index
    %158 = vector.load %arg12[%157, %c0_75, %c0_76, %c0_77] : memref<8x1x16x64xf32, #tpu.memory_space<vmem>>, vector<1x1x16x64xf32>
    %159 = vector.shape_cast %158 : vector<1x1x16x64xf32> to vector<1x16x64xf32>
    %160 = arith.mulf %159, %152 : vector<1x16x64xf32>
    %161 = arith.index_cast %c4_i32 : i32 to index
    %c0_78 = arith.constant 0 : index
    %c0_79 = arith.constant 0 : index
    %c0_80 = arith.constant 0 : index
    %162 = vector.load %arg13[%161, %c0_78, %c0_79, %c0_80] : memref<8x1x16x64xf32, #tpu.memory_space<vmem>>, vector<1x1x16x64xf32>
    %163 = vector.shape_cast %162 : vector<1x1x16x64xf32> to vector<1x16x64xf32>
    %164 = arith.addf %160, %163 : vector<1x16x64xf32>
    %165 = arith.index_cast %c4_i32 : i32 to index
    %c0_81 = arith.constant 0 : index
    %c0_82 = arith.constant 0 : index
    %c0_83 = arith.constant 0 : index
    %166 = vector.load %arg14[%165, %c0_81, %c0_82, %c0_83] : memref<8x1x16x64xf32, #tpu.memory_space<vmem>>, vector<1x1x16x64xf32>
    %167 = vector.shape_cast %166 : vector<1x1x16x64xf32> to vector<1x16x64xf32>
    %168 = vector.shape_cast %164 : vector<1x16x64xf32> to vector<1x1x16x64xf32>
    tpu.vector_store %arg14[%165, %c0_81, %c0_82, %c0_83], %168 {strides = array<i32>} : memref<8x1x16x64xf32, #tpu.memory_space<vmem>>, vector<1x1x16x64xf32>,
    %c5_i32 = arith.constant 5 : i32
    %169 = arith.index_cast %c5_i32 : i32 to index
    %c0_84 = arith.constant 0 : index
    %c0_85 = arith.constant 0 : index
    %c0_86 = arith.constant 0 : index
    %170 = vector.load %arg12[%169, %c0_84, %c0_85, %c0_86] : memref<8x1x16x64xf32, #tpu.memory_space<vmem>>, vector<1x1x16x64xf32>
    %171 = vector.shape_cast %170 : vector<1x1x16x64xf32> to vector<1x16x64xf32>
    %172 = arith.mulf %171, %164 : vector<1x16x64xf32>
    %173 = arith.index_cast %c5_i32 : i32 to index
    %c0_87 = arith.constant 0 : index
    %c0_88 = arith.constant 0 : index
    %c0_89 = arith.constant 0 : index
    %174 = vector.load %arg13[%173, %c0_87, %c0_88, %c0_89] : memref<8x1x16x64xf32, #tpu.memory_space<vmem>>, vector<1x1x16x64xf32>
    %175 = vector.shape_cast %174 : vector<1x1x16x64xf32> to vector<1x16x64xf32>
    %176 = arith.addf %172, %175 : vector<1x16x64xf32>
    %177 = arith.index_cast %c5_i32 : i32 to index
    %c0_90 = arith.constant 0 : index
    %c0_91 = arith.constant 0 : index
    %c0_92 = arith.constant 0 : index
    %178 = vector.load %arg14[%177, %c0_90, %c0_91, %c0_92] : memref<8x1x16x64xf32, #tpu.memory_space<vmem>>, vector<1x1x16x64xf32>
    %179 = vector.shape_cast %178 : vector<1x1x16x64xf32> to vector<1x16x64xf32>
    %180 = vector.shape_cast %176 : vector<1x16x64xf32> to vector<1x1x16x64xf32>
    tpu.vector_store %arg14[%177, %c0_90, %c0_91, %c0_92], %180 {strides = array<i32>} : memref<8x1x16x64xf32, #tpu.memory_space<vmem>>, vector<1x1x16x64xf32>,
    %c6_i32 = arith.constant 6 : i32
    %181 = arith.index_cast %c6_i32 : i32 to index
    %c0_93 = arith.constant 0 : index
    %c0_94 = arith.constant 0 : index
    %c0_95 = arith.constant 0 : index
    %182 = vector.load %arg12[%181, %c0_93, %c0_94, %c0_95] : memref<8x1x16x64xf32, #tpu.memory_space<vmem>>, vector<1x1x16x64xf32>
    %183 = vector.shape_cast %182 : vector<1x1x16x64xf32> to vector<1x16x64xf32>
    %184 = arith.mulf %183, %176 : vector<1x16x64xf32>
    %185 = arith.index_cast %c6_i32 : i32 to index
    %c0_96 = arith.constant 0 : index
    %c0_97 = arith.constant 0 : index
    %c0_98 = arith.constant 0 : index
    %186 = vector.load %arg13[%185, %c0_96, %c0_97, %c0_98] : memref<8x1x16x64xf32, #tpu.memory_space<vmem>>, vector<1x1x16x64xf32>
    %187 = vector.shape_cast %186 : vector<1x1x16x64xf32> to vector<1x16x64xf32>
    %188 = arith.addf %184, %187 : vector<1x16x64xf32>
    %189 = arith.index_cast %c6_i32 : i32 to index
    %c0_99 = arith.constant 0 : index
    %c0_100 = arith.constant 0 : index
    %c0_101 = arith.constant 0 : index
    %190 = vector.load %arg14[%189, %c0_99, %c0_100, %c0_101] : memref<8x1x16x64xf32, #tpu.memory_space<vmem>>, vector<1x1x16x64xf32>
    %191 = vector.shape_cast %190 : vector<1x1x16x64xf32> to vector<1x16x64xf32>
    %192 = vector.shape_cast %188 : vector<1x16x64xf32> to vector<1x1x16x64xf32>
    tpu.vector_store %arg14[%189, %c0_99, %c0_100, %c0_101], %192 {strides = array<i32>} : memref<8x1x16x64xf32, #tpu.memory_space<vmem>>, vector<1x1x16x64xf32>,
    %c7_i32 = arith.constant 7 : i32
    %193 = arith.index_cast %c7_i32 : i32 to index
    %c0_102 = arith.constant 0 : index
    %c0_103 = arith.constant 0 : index
    %c0_104 = arith.constant 0 : index
    %194 = vector.load %arg12[%193, %c0_102, %c0_103, %c0_104] : memref<8x1x16x64xf32, #tpu.memory_space<vmem>>, vector<1x1x16x64xf32>
    %195 = vector.shape_cast %194 : vector<1x1x16x64xf32> to vector<1x16x64xf32>
    %196 = arith.mulf %195, %188 : vector<1x16x64xf32>
    %197 = arith.index_cast %c7_i32 : i32 to index
    %c0_105 = arith.constant 0 : index
    %c0_106 = arith.constant 0 : index
    %c0_107 = arith.constant 0 : index
    %198 = vector.load %arg13[%197, %c0_105, %c0_106, %c0_107] : memref<8x1x16x64xf32, #tpu.memory_space<vmem>>, vector<1x1x16x64xf32>
    %199 = vector.shape_cast %198 : vector<1x1x16x64xf32> to vector<1x16x64xf32>
    %200 = arith.addf %196, %199 : vector<1x16x64xf32>
    %201 = arith.index_cast %c7_i32 : i32 to index
    %c0_108 = arith.constant 0 : index
    %c0_109 = arith.constant 0 : index
    %c0_110 = arith.constant 0 : index
    %202 = vector.load %arg14[%201, %c0_108, %c0_109, %c0_110] : memref<8x1x16x64xf32, #tpu.memory_space<vmem>>, vector<1x1x16x64xf32>
    %203 = vector.shape_cast %202 : vector<1x1x16x64xf32> to vector<1x16x64xf32>
    %204 = vector.shape_cast %200 : vector<1x16x64xf32> to vector<1x1x16x64xf32>
    tpu.vector_store %arg14[%201, %c0_108, %c0_109, %c0_110], %204 {strides = array<i32>} : memref<8x1x16x64xf32, #tpu.memory_space<vmem>>, vector<1x1x16x64xf32>,
    %c8_i32 = arith.constant 8 : i32
    %c0_111 = arith.constant 0 : index
    %c0_112 = arith.constant 0 : index
    %c0_113 = arith.constant 0 : index
    %c0_114 = arith.constant 0 : index
    %205 = vector.load %arg14[%c0_111, %c0_112, %c0_113, %c0_114] : memref<8x1x16x64xf32, #tpu.memory_space<vmem>>, vector<8x1x16x64xf32>
    %206 = vector.shape_cast %205 : vector<8x1x16x64xf32> to vector<8x16x64xf32>
    %207 = vector.shape_cast %86 : vector<8x16xf32> to vector<8x16x1xf32>
    %208 = vector.broadcast %207 : vector<8x16x1xf32> to vector<8x16x64xf32>
    %209 = arith.mulf %206, %208 : vector<8x16x64xf32>
    %cst_115 = arith.constant dense<0.000000e+00> : vector<8x64xf32>
    %210 = vector.multi_reduction <add>, %209, %cst_115 [1] : vector<8x16x64xf32> to vector<8x64xf32>
    %c0_116 = arith.constant 0 : index
    %c0_117 = arith.constant 0 : index
    %211 = vector.load %arg10[%c0_116, %c0_117] : memref<1x64xf32, #tpu.memory_space<vmem>>, vector<1x64xf32>
    %212 = vector.shape_cast %211 : vector<1x64xf32> to vector<64xf32>
    %213 = vector.shape_cast %212 : vector<64xf32> to vector<1x64xf32>
    %214 = vector.broadcast %213 : vector<1x64xf32> to vector<8x64xf32>
    %215 = arith.mulf %58, %214 : vector<8x64xf32>
    %216 = arith.addf %210, %215 : vector<8x64xf32>
    %217 = vector.extract_strided_slice %216 {offsets = [0, 0], sizes = [8, 32], strides = [1, 1]} : vector<8x64xf32> to vector<8x32xf32>
    %218 = vector.extract_strided_slice %216 {offsets = [0, 32], sizes = [8, 32], strides = [1, 1]} : vector<8x64xf32> to vector<8x32xf32>
    %219 = arith.addf %217, %218 : vector<8x32xf32>
    %220 = arith.mulf %219, %43 : vector<8x32xf32>
    %221 = arith.addf %0, %220 : vector<8x32xf32>
    %c0_118 = arith.constant 0 : index
    %c0_119 = arith.constant 0 : index
    %222 = vector.load %arg11[%c0_118, %c0_119] : memref<8x32xf32, #tpu.memory_space<vmem>>, vector<8x32xf32>
    tpu.vector_store %arg11[%c0_118, %c0_119], %221 {strides = array<i32>} : memref<8x32xf32, #tpu.memory_space<vmem>>, vector<8x32xf32>,
    return
  }
  func.func @transform_0(%arg0: i32) -> (i32, i32) {
    %c0_i32 = arith.constant 0 : i32
    %c0_i32_0 = arith.constant 0 : i32
    return %arg0, %c0_i32 : i32, i32
  }
  func.func @transform_1(%arg0: i32) -> (i32, i32) {
    %c0_i32 = arith.constant 0 : i32
    %c0_i32_0 = arith.constant 0 : i32
    %c0_i32_1 = arith.constant 0 : i32
    return %c0_i32, %c0_i32_0 : i32, i32
  }
  func.func @transform_2(%arg0: i32) -> (i32, i32) {
    %c0_i32 = arith.constant 0 : i32
    %c0_i32_0 = arith.constant 0 : i32
    %c0_i32_1 = arith.constant 0 : i32
    return %c0_i32, %c0_i32_0 : i32, i32
  }
  func.func @transform_3(%arg0: i32) -> (i32, i32) {
    %c0_i32 = arith.constant 0 : i32
    %c0_i32_0 = arith.constant 0 : i32
    %c0_i32_1 = arith.constant 0 : i32
    return %c0_i32, %c0_i32_0 : i32, i32
  }
  func.func @transform_4(%arg0: i32) -> (i32, i32) {
    %c0_i32 = arith.constant 0 : i32
    %c0_i32_0 = arith.constant 0 : i32
    %c0_i32_1 = arith.constant 0 : i32
    return %c0_i32, %c0_i32_0 : i32, i32
  }
  func.func @transform_5(%arg0: i32) -> (i32, i32) {
    %c0_i32 = arith.constant 0 : i32
    %c0_i32_0 = arith.constant 0 : i32
    %c0_i32_1 = arith.constant 0 : i32
    return %c0_i32, %c0_i32_0 : i32, i32
  }
  func.func @transform_6(%arg0: i32) -> (i32, i32) {
    %c0_i32 = arith.constant 0 : i32
    %c0_i32_0 = arith.constant 0 : i32
    %c0_i32_1 = arith.constant 0 : i32
    return %c0_i32, %c0_i32_0 : i32, i32
  }
  func.func @transform_7(%arg0: i32) -> (i32, i32) {
    %c0_i32 = arith.constant 0 : i32
    %c0_i32_0 = arith.constant 0 : i32
    %c0_i32_1 = arith.constant 0 : i32
    return %c0_i32, %c0_i32_0 : i32, i32
  }
  func.func @transform_8(%arg0: i32) -> (i32, i32) {
    %c0_i32 = arith.constant 0 : i32
    %c0_i32_0 = arith.constant 0 : i32
    %c0_i32_1 = arith.constant 0 : i32
    return %c0_i32, %c0_i32_0 : i32, i32
  }
  func.func @transform_9(%arg0: i32) -> (i32, i32) {
    %c0_i32 = arith.constant 0 : i32
    %c0_i32_0 = arith.constant 0 : i32
    %c0_i32_1 = arith.constant 0 : i32
    return %c0_i32, %c0_i32_0 : i32, i32
  }
  func.func @transform_10(%arg0: i32) -> (i32, i32) {
    %c0_i32 = arith.constant 0 : i32
    %c0_i32_0 = arith.constant 0 : i32
    return %arg0, %c0_i32 : i32, i32
  }
}

</mosaic_0001>

<llo_original>
// kernel: tpu_custom_call.1
$region0: #{tpu_custom_call.1}
  #allocation0 [shape = 'u32[]', space=smem, size = 0x4, offset = 0x4, fixed_abs, tag = 'smem constant byte address 0x4 - core index']
  #allocation1 [shape = 'u32[144,128]{1,0:T(1,128)}', space=vmem, size = 0x12000, scoped, tag = 'internal scratch']
  #allocation2 [shape = 'f32[8,1,16,64]{3,2,1,0:T(8,128)}', space=vmem, size = 0x10000, scoped, tag = 'scratch operand']
  #allocation3 [shape = 'f32[8,1,16,64]{3,2,1,0:T(8,128)}', space=vmem, size = 0x10000, scoped, tag = 'scratch operand']
  #allocation4 [shape = 'f32[8,1,16,64]{3,2,1,0:T(8,128)}', space=vmem, size = 0x10000, scoped, tag = 'scratch operand']
  %s0 = inlined_call_operand.vmem [shape: f32[16,32], index: 0, kind: input, shape index: {}]
  %s1 = inlined_call_operand.hbm [shape: f32[2,32], index: 1, kind: input, shape index: {}]
  %s2 = inlined_call_operand.vmem [shape: bf16[32,96], index: 2, kind: input, shape index: {}]
  %s3 = inlined_call_operand.vmem [shape: f32[1,96], index: 3, kind: input, shape index: {}]
  %s4 = inlined_call_operand.vmem [shape: bf16[64,48], index: 4, kind: input, shape index: {}]
  %s5 = inlined_call_operand.hbm [shape: bf16[16,64], index: 5, kind: input, shape index: {}]
  %s6 = inlined_call_operand.vmem [shape: f32[1,64], index: 6, kind: input, shape index: {}]
  %s7 = inlined_call_operand.vmem [shape: f32[16,64], index: 7, kind: input, shape index: {}]
  %s8 = inlined_call_operand.vmem [shape: f32[16,64], index: 8, kind: input, shape index: {}]
  %s9 = inlined_call_operand.vmem [shape: f32[1,64], index: 9, kind: input, shape index: {}]
  %s10 = inlined_call_operand.hbm [shape: f32[16,32], index: 10, kind: output, shape index: {}]
  %s11 = sld [smem:[#allocation0]]
  $region81: #{tpu_custom_call.1} parent=0
    _
  %s13 = ssub.s32 1, %s11
  %s14 = scalar_select 0, %s13, %s11
  $region1: #{tpu_custom_call.1} parent=0
    #allocation5 [shape = 'u8[1024]{0}', space=vmem, size = 0x400, scoped, tag = 'input window, operand 1, single buffered']
    #allocation6 [shape = 's32[2]{0}', space=sflag, size = 0x8, scoped, tag = 'scoped memory for tpu_custom_call.1']
    #allocation7 [shape = 's32[2]{0}', space=sflag, size = 0x8, scoped, tag = 'scoped memory for tpu_custom_call.1']
    #allocation8 [shape = 'u8[4096]{0}', space=vmem, size = 0x1000, scoped, tag = 'input window, operand 5, single buffered']
    #allocation9 [shape = 's32[1]{0}', space=sflag, size = 0x4, scoped, tag = 'scoped memory for tpu_custom_call.1']
    #allocation10 [shape = 'u8[8192]{0}', space=vmem, size = 0x2000, scoped, tag = 'output window, operand 0']
    %15 = vsyncpa [#allocation6], 0
    %16 = vsyncpa [#allocation9], 0
    %17 = vsyncpa [#allocation7], 0
    %s18 = scalar_lea.sflag [#allocation7], 1
    %19 = vsyncpa %s18, 0
    loop: start=0, step=1, limit=4
    $region2: #{tpu_custom_call.1} parent=1 // loop_pre_header
      _
    $region3: #{tpu_custom_call.1} parent=1 // loop_header
      %s21 = sphi 0, %s25
      %p22 = scmp.ge.s32.totalorder %s21, 4
      %s31 = sphi 0, %s33
      %s34 = sphi 0, %s31
      %s35 = sphi 0, %s34
      %s51 = sphi 0, %s35
      %s55 = sphi 0, %s55
      %s57 = sphi 0, %s55
      %s58 = sphi 0, %s57
      %s72 = sphi 0, %s58
      %s76 = sphi 0, %s76
      %s78 = sphi 0, %s76
      %s79 = sphi 0, %s78
      %s93 = sphi 0, %s79
      %s97 = sphi 0, %s97
      %s99 = sphi 0, %s97
      %s100 = sphi 0, %s99
      %s114 = sphi 0, %s100
      %s118 = sphi 0, %s118
      %s120 = sphi 0, %s118
      %s121 = sphi 0, %s120
      %s135 = sphi 0, %s121
      %s139 = sphi 0, %s139
      %s141 = sphi 0, %s139
      %s142 = sphi 0, %s141
      %s156 = sphi 0, %s142
      %s160 = sphi 0, %s160
      %s162 = sphi 0, %s160
      %s163 = sphi 0, %s162
      %s177 = sphi 0, %s163
      %s181 = sphi 0, %s181
      %s183 = sphi 0, %s181
      %s184 = sphi 0, %s183
      %s198 = sphi 0, %s184
      %s202 = sphi 0, %s202
      %s204 = sphi 0, %s202
      %s205 = sphi 0, %s204
      %s219 = sphi 0, %s205
      %s223 = sphi 0, %s223
      %s225 = sphi 0, %s223
      %s226 = sphi 0, %s225
      %s240 = sphi 0, %s226
      %s246 = sphi 0, %s248
      %s249 = sphi 0, %s246
      %s250 = sphi 0, %s249
      %s266 = sphi 0, %s250
    $region4: #{tpu_custom_call.1} parent=1 // loop_header_branch
      %24 = sbr.rel (%p22) target = $region8
    $region5: #{tpu_custom_call.1} parent=1 // loop_body
      %s26 = ssub.s32 %s21, 1
      %s27 = ssub.s32 %s21, 2
      %s28 = sadd.s32 %s21, 1
      %s29 = ssub.s32 %s21, %s28
      %p30 = scmp.eq.s32.totalorder %s29, 0
      %s32 = sadd.s32 %s31, 1
      %s33 = scalar_select %p30, %s31, %s32
      %p36 = pneg %p30
      %p37 = scmp.eq.s32.totalorder %s21, 1
      %p38 = por %p36, %p37
      %p39 = scmp.ne.s32.totalorder %s31, %s34
      %p40 = scmp.eq.s32.totalorder %s21, 0
      %p41 = por %p39, %p40
      %p42 = scmp.ne.s32.totalorder %s31, %s34
      %p43 = scmp.eq.s32.totalorder %s26, 1
      %p44 = por %p42, %p43
      %p45 = scmp.ne.s32.totalorder %s34, %s35
      %p46 = scmp.eq.s32.totalorder %s26, 0
      %p47 = por %p45, %p46
      %p48 = scmp.ne.s32.totalorder %s34, %s35
      %p49 = scmp.eq.s32.totalorder %s27, 1
      %p50 = por %p48, %p49
      %p52 = scmp.ne.s32.totalorder %s35, %s51
      %p53 = scmp.eq.s32.totalorder %s27, 0
      %p54 = por %p52, %p53
      %s56 = sadd.s32 %s55, 1
      %p59 = scmp.eq.s32.totalorder %s21, 1
      %p60 = scmp.ne.s32.totalorder %s55, %s57
      %p61 = scmp.eq.s32.totalorder %s21, 0
      %p62 = por %p60, %p61
      %p63 = scmp.ne.s32.totalorder %s55, %s57
      %p64 = scmp.eq.s32.totalorder %s26, 1
      %p65 = por %p63, %p64
      %p66 = scmp.ne.s32.totalorder %s57, %s58
      %p67 = scmp.eq.s32.totalorder %s26, 0
      %p68 = por %p66, %p67
      %p69 = scmp.ne.s32.totalorder %s57, %s58
      %p70 = scmp.eq.s32.totalorder %s27, 1
      %p71 = por %p69, %p70
      %p73 = scmp.ne.s32.totalorder %s58, %s72
      %p74 = scmp.eq.s32.totalorder %s27, 0
      %p75 = por %p73, %p74
      %s77 = sadd.s32 %s76, 1
      %p80 = scmp.eq.s32.totalorder %s21, 1
      %p81 = scmp.ne.s32.totalorder %s76, %s78
      %p82 = scmp.eq.s32.totalorder %s21, 0
      %p83 = por %p81, %p82
      %p84 = scmp.ne.s32.totalorder %s76, %s78
      %p85 = scmp.eq.s32.totalorder %s26, 1
      %p86 = por %p84, %p85
      %p87 = scmp.ne.s32.totalorder %s78, %s79
      %p88 = scmp.eq.s32.totalorder %s26, 0
      %p89 = por %p87, %p88
      %p90 = scmp.ne.s32.totalorder %s78, %s79
      %p91 = scmp.eq.s32.totalorder %s27, 1
      %p92 = por %p90, %p91
      %p94 = scmp.ne.s32.totalorder %s79, %s93
      %p95 = scmp.eq.s32.totalorder %s27, 0
      %p96 = por %p94, %p95
      %s98 = sadd.s32 %s97, 1
      %p101 = scmp.eq.s32.totalorder %s21, 1
      %p102 = scmp.ne.s32.totalorder %s97, %s99
      %p103 = scmp.eq.s32.totalorder %s21, 0
      %p104 = por %p102, %p103
      %p105 = scmp.ne.s32.totalorder %s97, %s99
      %p106 = scmp.eq.s32.totalorder %s26, 1
      %p107 = por %p105, %p106
      %p108 = scmp.ne.s32.totalorder %s99, %s100
      %p109 = scmp.eq.s32.totalorder %s26, 0
      %p110 = por %p108, %p109
      %p111 = scmp.ne.s32.totalorder %s99, %s100
      %p112 = scmp.eq.s32.totalorder %s27, 1
      %p113 = por %p111, %p112
      %p115 = scmp.ne.s32.totalorder %s100, %s114
      %p116 = scmp.eq.s32.totalorder %s27, 0
      %p117 = por %p115, %p116
      %s119 = sadd.s32 %s118, 1
      %p122 = scmp.eq.s32.totalorder %s21, 1
      %p123 = scmp.ne.s32.totalorder %s118, %s120
      %p124 = scmp.eq.s32.totalorder %s21, 0
      %p125 = por %p123, %p124
      %p126 = scmp.ne.s32.totalorder %s118, %s120
      %p127 = scmp.eq.s32.totalorder %s26, 1
      %p128 = por %p126, %p127
      %p129 = scmp.ne.s32.totalorder %s120, %s121
      %p130 = scmp.eq.s32.totalorder %s26, 0
      %p131 = por %p129, %p130
      %p132 = scmp.ne.s32.totalorder %s120, %s121
      %p133 = scmp.eq.s32.totalorder %s27, 1
      %p134 = por %p132, %p133
      %p136 = scmp.ne.s32.totalorder %s121, %s135
      %p137 = scmp.eq.s32.totalorder %s27, 0
      %p138 = por %p136, %p137
      %s140 = sadd.s32 %s139, 1
      %p143 = scmp.eq.s32.totalorder %s21, 1
      %p144 = scmp.ne.s32.totalorder %s139, %s141
      %p145 = scmp.eq.s32.totalorder %s21, 0
      %p146 = por %p144, %p145
      %p147 = scmp.ne.s32.totalorder %s139, %s141
      %p148 = scmp.eq.s32.totalorder %s26, 1
      %p149 = por %p147, %p148
      %p150 = scmp.ne.s32.totalorder %s141, %s142
      %p151 = scmp.eq.s32.totalorder %s26, 0
      %p152 = por %p150, %p151
      %p153 = scmp.ne.s32.totalorder %s141, %s142
      %p154 = scmp.eq.s32.totalorder %s27, 1
      %p155 = por %p153, %p154
      %p157 = scmp.ne.s32.totalorder %s142, %s156
      %p158 = scmp.eq.s32.totalorder %s27, 0
      %p159 = por %p157, %p158
      %s161 = sadd.s32 %s160, 1
      %p164 = scmp.eq.s32.totalorder %s21, 1
      %p165 = scmp.ne.s32.totalorder %s160, %s162
      %p166 = scmp.eq.s32.totalorder %s21, 0
      %p167 = por %p165, %p166
      %p168 = scmp.ne.s32.totalorder %s160, %s162
      %p169 = scmp.eq.s32.totalorder %s26, 1
      %p170 = por %p168, %p169
      %p171 = scmp.ne.s32.totalorder %s162, %s163
      %p172 = scmp.eq.s32.totalorder %s26, 0
      %p173 = por %p171, %p172
      %p174 = scmp.ne.s32.totalorder %s162, %s163
      %p175 = scmp.eq.s32.totalorder %s27, 1
      %p176 = por %p174, %p175
      %p178 = scmp.ne.s32.totalorder %s163, %s177
      %p179 = scmp.eq.s32.totalorder %s27, 0
      %p180 = por %p178, %p179
      %s182 = sadd.s32 %s181, 1
      %p185 = scmp.eq.s32.totalorder %s21, 1
      %p186 = scmp.ne.s32.totalorder %s181, %s183
      %p187 = scmp.eq.s32.totalorder %s21, 0
      %p188 = por %p186, %p187
      %p189 = scmp.ne.s32.totalorder %s181, %s183
      %p190 = scmp.eq.s32.totalorder %s26, 1
      %p191 = por %p189, %p190
      %p192 = scmp.ne.s32.totalorder %s183, %s184
      %p193 = scmp.eq.s32.totalorder %s26, 0
      %p194 = por %p192, %p193
      %p195 = scmp.ne.s32.totalorder %s183, %s184
      %p196 = scmp.eq.s32.totalorder %s27, 1
      %p197 = por %p195, %p196
      %p199 = scmp.ne.s32.totalorder %s184, %s198
      %p200 = scmp.eq.s32.totalorder %s27, 0
      %p201 = por %p199, %p200
      %s203 = sadd.s32 %s202, 1
      %p206 = scmp.eq.s32.totalorder %s21, 1
      %p207 = scmp.ne.s32.totalorder %s202, %s204
      %p208 = scmp.eq.s32.totalorder %s21, 0
      %p209 = por %p207, %p208
      %p210 = scmp.ne.s32.totalorder %s202, %s204
      %p211 = scmp.eq.s32.totalorder %s26, 1
      %p212 = por %p210, %p211
      %p213 = scmp.ne.s32.totalorder %s204, %s205
      %p214 = scmp.eq.s32.totalorder %s26, 0
      %p215 = por %p213, %p214
      %p216 = scmp.ne.s32.totalorder %s204, %s205
      %p217 = scmp.eq.s32.totalorder %s27, 1
      %p218 = por %p216, %p217
      %p220 = scmp.ne.s32.totalorder %s205, %s219
      %p221 = scmp.eq.s32.totalorder %s27, 0
      %p222 = por %p220, %p221
      %s224 = sadd.s32 %s223, 1
      %p227 = scmp.eq.s32.totalorder %s21, 1
      %p228 = scmp.ne.s32.totalorder %s223, %s225
      %p229 = scmp.eq.s32.totalorder %s21, 0
      %p230 = por %p228, %p229
      %p231 = scmp.ne.s32.totalorder %s223, %s225
      %p232 = scmp.eq.s32.totalorder %s26, 1
      %p233 = por %p231, %p232
      %p234 = scmp.ne.s32.totalorder %s225, %s226
      %p235 = scmp.eq.s32.totalorder %s26, 0
      %p236 = por %p234, %p235
      %p237 = scmp.ne.s32.totalorder %s225, %s226
      %p238 = scmp.eq.s32.totalorder %s27, 1
      %p239 = por %p237, %p238
      %p241 = scmp.ne.s32.totalorder %s226, %s240
      %p242 = scmp.eq.s32.totalorder %s27, 0
      %p243 = por %p241, %p242
      %s244 = ssub.s32 %s21, %s28
      %p245 = scmp.eq.s32.totalorder %s244, 0
      %s247 = sadd.s32 %s246, 1
      %s248 = scalar_select %p245, %s246, %s247
      %p251 = pneg %p245
      %p252 = scmp.eq.s32.totalorder %s21, 1
      %p253 = por %p251, %p252
      %p254 = scmp.ne.s32.totalorder %s246, %s249
      %p255 = scmp.eq.s32.totalorder %s21, 0
      %p256 = por %p254, %p255
      %p257 = scmp.ne.s32.totalorder %s246, %s249
      %p258 = scmp.eq.s32.totalorder %s26, 1
      %p259 = por %p257, %p258
      %p260 = scmp.ne.s32.totalorder %s249, %s250
      %p261 = scmp.eq.s32.totalorder %s26, 0
      %p262 = por %p260, %p261
      %p263 = scmp.ne.s32.totalorder %s249, %s250
      %p264 = scmp.eq.s32.totalorder %s27, 1
      %p265 = por %p263, %p264
      %p267 = scmp.ne.s32.totalorder %s250, %s266
      %p268 = scmp.eq.s32.totalorder %s27, 0
      %p269 = por %p267, %p268
      %p270 = scmp.le.s32.totalorder 1, %s21
      %p271 = scmp.lt.s32.totalorder %s21, 3
      %p272 = pnand %p270, %p271
      %p273 = pneg %p272
      // Predicated region
      $region9: #{tpu_custom_call.1} parent=5 // pred_check
        _
      $region10: #{tpu_custom_call.1} parent=5 // pred_check_branch
        %275 = sbr.rel (%p272) target = $region12
      $region11: #{tpu_custom_call.1} parent=5 // pred_region
        %s276 = ssub.s32 %s21, 1
        // Predicated region
        $region13: #{tpu_custom_call.1} parent=11 // pred_check
          %p277 = pneg %p68
        $region14: #{tpu_custom_call.1} parent=11 // pred_check_branch
          %279 = sbr.rel (%p277) target = $region16
        $region15: #{tpu_custom_call.1} parent=11 // pred_region
          %s281 = ssub.s32 32, 32
          %282 = vsyncadd [#allocation6], %s281
          %s284 = sshll.u32 [#allocation5], 4
          %s285 = int_to_ptr.vmem [resolvable:$true] %s284
          %287 = dma.hbm_to_vmem [thread:$0]  %s1, 32, %s285, [#allocation6]
        $region16: #{tpu_custom_call.1} parent=11 // pred_fallthru
          _
        // Predicated region
        $region17: #{tpu_custom_call.1} parent=11 // pred_check
          %p288 = pneg %p89
        $region18: #{tpu_custom_call.1} parent=11 // pred_check_branch
          %290 = sbr.rel (%p288) target = $region20
        $region19: #{tpu_custom_call.1} parent=11 // pred_region
          _
        $region20: #{tpu_custom_call.1} parent=11 // pred_fallthru
          _
        // Predicated region
        $region21: #{tpu_custom_call.1} parent=11 // pred_check
          %p291 = pneg %p110
        $region22: #{tpu_custom_call.1} parent=11 // pred_check_branch
          %293 = sbr.rel (%p291) target = $region24
        $region23: #{tpu_custom_call.1} parent=11 // pred_region
          _
        $region24: #{tpu_custom_call.1} parent=11 // pred_fallthru
          _
        // Predicated region
        $region25: #{tpu_custom_call.1} parent=11 // pred_check
          %p294 = pneg %p131
        $region26: #{tpu_custom_call.1} parent=11 // pred_check_branch
          %296 = sbr.rel (%p294) target = $region28
        $region27: #{tpu_custom_call.1} parent=11 // pred_region
          _
        $region28: #{tpu_custom_call.1} parent=11 // pred_fallthru
          _
        // Predicated region
        $region29: #{tpu_custom_call.1} parent=11 // pred_check
          %p297 = pneg %p152
        $region30: #{tpu_custom_call.1} parent=11 // pred_check_branch
          %299 = sbr.rel (%p297) target = $region32
        $region31: #{tpu_custom_call.1} parent=11 // pred_region
          %s301 = ssub.s32 128, 128
          %302 = vsyncadd [#allocation9], %s301
          %s303 = sshll.u32 [#allocation8], 4
          %s304 = int_to_ptr.vmem [resolvable:$true] %s303
          %309 = dma.hbm_to_vmem [thread:$0]  %s5, 128, %s304, [#allocation9], 64, 64, 4
        $region32: #{tpu_custom_call.1} parent=11 // pred_fallthru
          _
        // Predicated region
        $region33: #{tpu_custom_call.1} parent=11 // pred_check
          %p310 = pneg %p173
        $region34: #{tpu_custom_call.1} parent=11 // pred_check_branch
          %312 = sbr.rel (%p310) target = $region36
        $region35: #{tpu_custom_call.1} parent=11 // pred_region
          _
        $region36: #{tpu_custom_call.1} parent=11 // pred_fallthru
          _
        // Predicated region
        $region37: #{tpu_custom_call.1} parent=11 // pred_check
          %p313 = pneg %p194
        $region38: #{tpu_custom_call.1} parent=11 // pred_check_branch
          %315 = sbr.rel (%p313) target = $region40
        $region39: #{tpu_custom_call.1} parent=11 // pred_region
          _
        $region40: #{tpu_custom_call.1} parent=11 // pred_fallthru
          _
        // Predicated region
        $region41: #{tpu_custom_call.1} parent=11 // pred_check
          %p316 = pneg %p215
        $region42: #{tpu_custom_call.1} parent=11 // pred_check_branch
          %318 = sbr.rel (%p316) target = $region44
        $region43: #{tpu_custom_call.1} parent=11 // pred_region
          _
        $region44: #{tpu_custom_call.1} parent=11 // pred_fallthru
          _
        // Predicated region
        $region45: #{tpu_custom_call.1} parent=11 // pred_check
          %p319 = pneg %p236
        $region46: #{tpu_custom_call.1} parent=11 // pred_check_branch
          %321 = sbr.rel (%p319) target = $region48
        $region47: #{tpu_custom_call.1} parent=11 // pred_region
          _
        $region48: #{tpu_custom_call.1} parent=11 // pred_fallthru
          _
      $region12: #{tpu_custom_call.1} parent=5 // pred_fallthru
        _
      %p322 = scmp.lt.s32.totalorder %s21, 2
      // Predicated region
      $region49: #{tpu_custom_call.1} parent=5 // pred_check
        %p323 = pneg %p322
      $region50: #{tpu_custom_call.1} parent=5 // pred_check_branch
        %325 = sbr.rel (%p323) target = $region52
      $region51: #{tpu_custom_call.1} parent=5 // pred_region
        // Predicated region
        $region53: #{tpu_custom_call.1} parent=51 // pred_check
          %p326 = pneg %p41
        $region54: #{tpu_custom_call.1} parent=51 // pred_check_branch
          %328 = sbr.rel (%p326) target = $region56
        $region55: #{tpu_custom_call.1} parent=51 // pred_region
          %p329 = scmp.lt.s32.totalorder %s21, 1
          %s330 = scalar_select %p329, %s21, 1
          %s331 = smul.addr %s330, 8
          %s332 = scalar_lea.vmem %s0, %s331
        $region56: #{tpu_custom_call.1} parent=51 // pred_fallthru
          _
      $region52: #{tpu_custom_call.1} parent=5 // pred_fallthru
        _
      %p333 = scmp.le.s32.totalorder 1, %s21
      %p334 = scmp.lt.s32.totalorder %s21, 3
      %p335 = pnand %p333, %p334
      %p336 = pneg %p335
      // Predicated region
      $region57: #{tpu_custom_call.1} parent=5 // pred_check
        _
      $region58: #{tpu_custom_call.1} parent=5 // pred_check_branch
        %338 = sbr.rel (%p335) target = $region60
      $region59: #{tpu_custom_call.1} parent=5 // pred_region
        %s339 = ssub.s32 %s21, 1
        // Predicated region
        $region61: #{tpu_custom_call.1} parent=59 // pred_check
          %p340 = pneg %p68
        $region62: #{tpu_custom_call.1} parent=59 // pred_check_branch
          %342 = sbr.rel (%p340) target = $region64
        $region63: #{tpu_custom_call.1} parent=59 // pred_region
          %343 = dma.done [#allocation6], 32
        $region64: #{tpu_custom_call.1} parent=59 // pred_fallthru
          _
        // Predicated region
        $region65: #{tpu_custom_call.1} parent=59 // pred_check
          %p344 = pneg %p152
        $region66: #{tpu_custom_call.1} parent=59 // pred_check_branch
          %346 = sbr.rel (%p344) target = $region68
        $region67: #{tpu_custom_call.1} parent=59 // pred_region
          %347 = dma.done [#allocation9], 128
        $region68: #{tpu_custom_call.1} parent=59 // pred_fallthru
          _
        %p348 = scmp.lt.s32.totalorder %s26, 1
        %s349 = scalar_select %p348, %s26, 1
        %s350 = smul.addr %s349, 8
        %s351 = scalar_lea.vmem %s0, %s350
        %p352 = pneg %p47
        %p353 = pneg %p44
        %p354 = pneg %p68
        %p355 = pneg %p65
        %p356 = pneg %p89
        %p357 = pneg %p86
        %p358 = pneg %p110
        %p359 = pneg %p107
        %p360 = pneg %p131
        %p361 = pneg %p128
        %p362 = pneg %p152
        %p363 = pneg %p149
        %p364 = pneg %p173
        %p365 = pneg %p170
        %p366 = pneg %p194
        %p367 = pneg %p191
        %p368 = pneg %p215
        %p369 = pneg %p212
        %p370 = pneg %p236
        %p371 = pneg %p233
        %p372 = pneg %p262
        %p373 = pneg %p259
        %s374 = sand.u32 %s249, 1
        %s375 = scalar_lea.sflag [#allocation7], %s374
        %s376 = sand.u32 %s249, 1
        %s377 = smul.addr %s376, 8
        %s378 = scalar_lea.vmem [#allocation10], %s377
        %p379 = scmp.lt.s32.totalorder %s26, 1
        %s380 = scalar_select %p379, %s26, 1
        %s381 = smul.addr %s380, 8
        %s382 = scalar_lea.vmem %s0, %s381
        %v384 = vld [vmem:[%s382] sm:$0xff]
        %vm385 = vcmask 261120
        %v386 = vsel %vm385, %v384, 0.0
        %387 = vadd.xlane.f32.xlu0 %v386
        %v388 = vpop.xlane.xlu0 %387
        %v389 = vrcp.pop 32.0
        %v390 = vmul.f32 %v388, %v389
        %v391 = vsub.f32 %v384, %v390
        %v392 = vmul.f32 %v391, %v391
        %v393 = vsel %vm385, %v392, 0.0
        %394 = vadd.xlane.f32.xlu0 %v393
        %v395 = vpop.xlane.xlu0 %394
        %v396 = vmul.f32 %v395, %v389
        %v397 = vadd.f32 %v396, 1e-05
        %v398 = vrsqrt.pop %v397
        %v399 = vmul.f32 %v391, %v398
        %v400 = vld [vmem:[#allocation5] sm:$0x1]
        %v401 = vlaneseq
        %v402 = vshrl.u32 %v401, 7
        %v403 = vsub.s32 0, %v402
        %v404 = vrot.slane %v400, %v403
        %v405 = vmul.f32 %v399, %v404
        %v406 = vld [vmem:[#allocation5 + $0x1] sm:$0x1]
        %v407 = vlaneseq
        %v408 = vshrl.u32 %v407, 7
        %v409 = vsub.s32 0, %v408
        %v410 = vrot.slane %v406, %v409
        %v411 = vadd.f32 %v405, %v410
        %v412 = vpack.c.bf16 %v411, %v411
        %v413 = vld [vmem:[%s2] sm:$0xf]
        %v414 = vld [vmem:[%s2 + $0x4] sm:$0xf]
        %v415 = vld [vmem:[%s2 + $0x8] sm:$0xf]
        %v416 = vld [vmem:[%s2 + $0xc] sm:$0xf]
        %v417 = vld [vmem:[%s3] sm:$0x1]
        %v419 = vlaneseq
        %v420 = vshrl.u32 %v419, 7
        %v421 = vsub.s32 0, %v420
        %v422 = vrot.slane %v417, %v421
        %v428 = vunpack.c.l.b16 %v413
        %v429 = vunpack.c.l.b16 %v414
        %v430 = vunpack.c.l.b16 %v415
        %v431 = vunpack.c.l.b16 %v416
        %v432 = vpack.c.b16 %v429, %v428
        %v433 = vpack.c.b16 %v431, %v430
        %v437 = vsel %vm385, %v412, 0
        %439 = vmatprep.subr.bf16.mxu0 0
        %440 = vmatpush1.bf16.msra.mxu0 0
        %441 = vmatprep.subr.bf16.mxu0 0
        %442 = vmatpush1.bf16.msra.mxu0 0
        %443 = vmatprep.subr.bf16.mxu0 0
        %444 = vmatpush1.bf16.msra.mxu0 0
        %445 = vmatprep.subr.bf16.mxu0 0
        %446 = vmatpush1.bf16.msra.mxu0 0
        %447 = vmatprep.subr.bf16.mxu0 0
        %448 = vmatpush1.bf16.msra.mxu0 0
        %449 = vmatprep.subr.bf16.mxu0 0
        %450 = vmatpush1.bf16.msra.mxu0 0
        %451 = vmatprep.subr.bf16.mxu0 0
        %452 = vmatpush1.bf16.msra.mxu0 %v433
        %453 = vmatprep.subr.bf16.mxu0 0
        %454 = vmatpush1.bf16.msra.mxu0 %v432
        %455 = vmatprep.subr.bf16.mxu0 0
        %456 = vmatpush2.bf16.msra.mxu0 0
        %457 = vmatprep.subr.bf16.mxu0 0
        %458 = vmatpush2.bf16.msra.mxu0 0
        %459 = vmatprep.subr.bf16.mxu0 0
        %460 = vmatpush2.bf16.msra.mxu0 0
        %461 = vmatprep.subr.bf16.mxu0 0
        %462 = vmatpush2.bf16.msra.mxu0 0
        %463 = vmatprep.subr.bf16.mxu0 0
        %464 = vmatpush2.bf16.msra.mxu0 0
        %465 = vmatprep.subr.bf16.mxu0 0
        %466 = vmatpush2.bf16.msra.mxu0 0
        %467 = vmatprep.subr.bf16.mxu0 0
        %468 = vmatpush2.bf16.msra.mxu0 0
        %469 = vmatprep.subr.bf16.mxu0 0
        %470 = vmatpush2.bf16.msra.mxu0 0
        %471 = vmatprep.mubr.bf16.mxu0 0
        %472 = vmatmul.mubr.bf16.gmra.mxu0 %v437
        %v473 = vpop.f32.mrf.mxu0
        %v474 = vadd.f32 %v422, %v473
        %v475 = vpop.f32.mrf.mxu0
        %v476 = vpop.f32.mrf.mxu0
        %v477 = vpop.f32.mrf.mxu0
        %478 = vdwg.mxu0
        %v479 = vxor.u32 %v474, 2147483648
        %v480 = vmul.f32 %v479, 1.442695
        %v481 = vpow.pop %v480
        %v482 = vadd.f32 %v481, 1.0
        %v483 = vrcp.pop %v482
        %v484 = vmul.f32 1.0, %v483
        %v485 = vmul.f32 %v474, %v484
        %v486 = vmax.f32 %v474, 0.0
        %vm487 = vcmp.ne.f32.partialorder %v474, %v474
        %v488 = vadd.f32 %v474, 0.0
        %v489 = vand.u32 2147483647, %v474
        %v490 = vsub.f32 0.0, %v489
        %v491 = vmul.f32 %v490, 1.442695
        %v492 = vpow.pop %v491
        %v493 = vadd.f32 %v492, 1.0
        %v494 = vlog2.pop %v493
        %v495 = vmul.f32 %v494, 0.6931472
        %v496 = vmul.f32 -0.5, %v492
        %v497 = vadd.f32 %v496, 1.0
        %v498 = vmul.f32 %v497, %v492
        %v499 = vand.u32 2147483647, %v492
        %vm500 = vcmp.lt.f32.partialorder %v499, 0.0004427343
        %v501 = vsel %vm500, %v498, %v495
        %v502 = vadd.f32 %v486, %v501
        %v503 = vsel %vm487, %v488, %v502
        %v504 = vpack.c.bf16 %v503, %v503
        %v505 = vld [vmem:[%s4] sm:$0xf]
        %v506 = vld [vmem:[%s4 + $0x4] sm:$0xf]
        %v507 = vld [vmem:[%s4 + $0x8] sm:$0xf]
        %v508 = vld [vmem:[%s4 + $0xc] sm:$0xf]
        %v509 = vld [vmem:[%s4 + $0x10] sm:$0xf]
        %v510 = vld [vmem:[%s4 + $0x14] sm:$0xf]
        %v511 = vld [vmem:[%s4 + $0x18] sm:$0xf]
        %v512 = vld [vmem:[%s4 + $0x1c] sm:$0xf]
        %514 = vrot.lane.b32.xlu0 %v504, 96
        %v515 = vpop.permute.xlu0 %514
        %v524 = vunpack.c.l.b16 %v505
        %v525 = vunpack.c.l.b16 %v506
        %v526 = vunpack.c.l.b16 %v507
        %v527 = vunpack.c.l.b16 %v508
        %v528 = vunpack.c.l.b16 %v509
        %v529 = vunpack.c.l.b16 %v510
        %v530 = vunpack.c.l.b16 %v511
        %v531 = vunpack.c.l.b16 %v512
        %v532 = vpack.c.b16 %v525, %v524
        %v533 = vpack.c.b16 %v527, %v526
        %v534 = vpack.c.b16 %v529, %v528
        %v535 = vpack.c.b16 %v531, %v530
        %vm540 = vcmask 523264
        %v542 = vsel %vm540, %v515, 0
        %544 = vmatprep.subr.bf16.mxu0 0
        %545 = vmatpush1.bf16.msra.mxu0 0
        %546 = vmatprep.subr.bf16.mxu0 0
        %547 = vmatpush1.bf16.msra.mxu0 0
        %548 = vmatprep.subr.bf16.mxu0 0
        %549 = vmatpush1.bf16.msra.mxu0 0
        %550 = vmatprep.subr.bf16.mxu0 0
        %551 = vmatpush1.bf16.msra.mxu0 0
        %552 = vmatprep.subr.bf16.mxu0 0
        %553 = vmatpush1.bf16.msra.mxu0 %v535
        %554 = vmatprep.subr.bf16.mxu0 0
        %555 = vmatpush1.bf16.msra.mxu0 %v534
        %556 = vmatprep.subr.bf16.mxu0 0
        %557 = vmatpush1.bf16.msra.mxu0 %v533
        %558 = vmatprep.subr.bf16.mxu0 0
        %559 = vmatpush1.bf16.msra.mxu0 %v532
        %560 = vmatprep.subr.bf16.mxu0 0
        %561 = vmatpush2.bf16.msra.mxu0 0
        %562 = vmatprep.subr.bf16.mxu0 0
        %563 = vmatpush2.bf16.msra.mxu0 0
        %564 = vmatprep.subr.bf16.mxu0 0
        %565 = vmatpush2.bf16.msra.mxu0 0
        %566 = vmatprep.subr.bf16.mxu0 0
        %567 = vmatpush2.bf16.msra.mxu0 0
        %568 = vmatprep.subr.bf16.mxu0 0
        %569 = vmatpush2.bf16.msra.mxu0 0
        %570 = vmatprep.subr.bf16.mxu0 0
        %571 = vmatpush2.bf16.msra.mxu0 0
        %572 = vmatprep.subr.bf16.mxu0 0
        %573 = vmatpush2.bf16.msra.mxu0 0
        %574 = vmatprep.subr.bf16.mxu0 0
        %575 = vmatpush2.bf16.msra.mxu0 0
        %576 = vmatprep.mubr.bf16.mxu0 0
        %577 = vmatmul.mubr.bf16.gmra.mxu0 %v542
        %v578 = vpop.f32.mrf.mxu0
        %v579 = vadd.f32 0.0, %v578
        %v580 = vpop.f32.mrf.mxu0
        %v581 = vpop.f32.mrf.mxu0
        %v582 = vpop.f32.mrf.mxu0
        %583 = vdwg.mxu0
        %v584 = vpack.c.bf16 %v579, %v579
        %v585 = vld [vmem:[#allocation8] sm:$0xf]
        %v586 = vld [vmem:[#allocation8 + $0x4] sm:$0xf]
        %v587 = vld [vmem:[%s6] sm:$0x1]
        %v589 = vlaneseq
        %v590 = vshrl.u32 %v589, 7
        %v591 = vsub.s32 0, %v590
        %v592 = vrot.slane %v587, %v591
        %v596 = vunpack.c.l.b16 %v585
        %v597 = vunpack.c.l.b16 %v586
        %v598 = vpack.c.b16 %v597, %v596
        %vm600 = vcmask 130048
        %v602 = vsel %vm600, %v584, 0
        %604 = vmatprep.subr.bf16.mxu0 0
        %605 = vmatpush1.bf16.msra.mxu0 0
        %606 = vmatprep.subr.bf16.mxu0 0
        %607 = vmatpush1.bf16.msra.mxu0 0
        %608 = vmatprep.subr.bf16.mxu0 0
        %609 = vmatpush1.bf16.msra.mxu0 0
        %610 = vmatprep.subr.bf16.mxu0 0
        %611 = vmatpush1.bf16.msra.mxu0 0
        %612 = vmatprep.subr.bf16.mxu0 0
        %613 = vmatpush1.bf16.msra.mxu0 0
        %614 = vmatprep.subr.bf16.mxu0 0
        %615 = vmatpush1.bf16.msra.mxu0 0
        %616 = vmatprep.subr.bf16.mxu0 0
        %617 = vmatpush1.bf16.msra.mxu0 0
        %618 = vmatprep.subr.bf16.mxu0 0
        %619 = vmatpush1.bf16.msra.mxu0 %v598
        %620 = vmatprep.subr.bf16.mxu0 0
        %621 = vmatpush2.bf16.msra.mxu0 0
        %622 = vmatprep.subr.bf16.mxu0 0
        %623 = vmatpush2.bf16.msra.mxu0 0
        %624 = vmatprep.subr.bf16.mxu0 0
        %625 = vmatpush2.bf16.msra.mxu0 0
        %626 = vmatprep.subr.bf16.mxu0 0
        %627 = vmatpush2.bf16.msra.mxu0 0
        %628 = vmatprep.subr.bf16.mxu0 0
        %629 = vmatpush2.bf16.msra.mxu0 0
        %630 = vmatprep.subr.bf16.mxu0 0
        %631 = vmatpush2.bf16.msra.mxu0 0
        %632 = vmatprep.subr.bf16.mxu0 0
        %633 = vmatpush2.bf16.msra.mxu0 0
        %634 = vmatprep.subr.bf16.mxu0 0
        %635 = vmatpush2.bf16.msra.mxu0 0
        %636 = vmatprep.mubr.bf16.mxu0 0
        %637 = vmatmul.mubr.bf16.gmra.mxu0 %v602
        %v638 = vpop.f32.mrf.mxu0
        %v639 = vadd.f32 %v592, %v638
        %v640 = vpop.f32.mrf.mxu0
        %v641 = vpop.f32.mrf.mxu0
        %v642 = vpop.f32.mrf.mxu0
        %643 = vdwg.mxu0
        %v644 = vmax.f32 %v639, 0.0
        %vm645 = vcmp.ne.f32.partialorder %v639, %v639
        %v646 = vadd.f32 %v639, 0.0
        %v647 = vand.u32 2147483647, %v639
        %v648 = vsub.f32 0.0, %v647
        %v649 = vmul.f32 %v648, 1.442695
        %v650 = vpow.pop %v649
        %v651 = vadd.f32 %v650, 1.0
        %v652 = vlog2.pop %v651
        %v653 = vmul.f32 %v652, 0.6931472
        %v654 = vmul.f32 -0.5, %v650
        %v655 = vadd.f32 %v654, 1.0
        %v656 = vmul.f32 %v655, %v650
        %v657 = vand.u32 2147483647, %v650
        %vm658 = vcmp.lt.f32.partialorder %v657, 0.0004427343
        %v659 = vsel %vm658, %v656, %v653
        %v660 = vadd.f32 %v644, %v659
        %v661 = vsel %vm645, %v646, %v660
        %v662 = vld [vmem:[%s7] sm:$0xff]
        %v663 = vld [vmem:[%s7 + $0x8] sm:$0xff]
        %v664 = vld [vmem:[%s8] sm:$0xff]
        %v665 = vld [vmem:[%s8 + $0x8] sm:$0xff]
        %667 = vrot.lane.b32.xlu0 %v503, 96
        %v668 = vpop.permute.xlu0 %667
        %v670 = vmul.f32 %v661, %v668
        %v672 = vcombine.high %v661, %v661
        %v674 = vunpack.c.l.s4 1966171168
        %v675 = vunpack.c.0.s8 %v674
        %v676 = vlaneseq
        %v677 = vshrl.u32 %v676, 7
        %v678 = vsub.s32 %v675, %v677
        %v679 = vrot.slane %v661, %v678
        %v681 = vunpack.c.l.s4 1966171168
        %v682 = vunpack.c.0.s8 %v681
        %v683 = vlaneseq
        %v684 = vshrl.u32 %v683, 7
        %v685 = vsub.s32 %v682, %v684
        %v686 = vrot.slane %v672, %v685
        %v687 = vcombine.high %v679, %v679
        %v688 = vcombine.high %v686, %v686
        %v690 = vunpack.c.l.s4 1966171168
        %v691 = vunpack.c.0.s8 %v690
        %v692 = vlaneseq
        %v693 = vshrl.u32 %v692, 7
        %v694 = vsub.s32 %v691, %v693
        %v695 = vrot.slane %v679, %v694
        %v697 = vunpack.c.l.s4 1966171168
        %v698 = vunpack.c.0.s8 %v697
        %v699 = vlaneseq
        %v700 = vshrl.u32 %v699, 7
        %v701 = vsub.s32 %v698, %v700
        %v702 = vrot.slane %v686, %v701
        %v704 = vunpack.c.l.s4 1966171168
        %v705 = vunpack.c.0.s8 %v704
        %v706 = vlaneseq
        %v707 = vshrl.u32 %v706, 7
        %v708 = vsub.s32 %v705, %v707
        %v709 = vrot.slane %v687, %v708
        %v711 = vunpack.c.l.s4 1966171168
        %v712 = vunpack.c.0.s8 %v711
        %v713 = vlaneseq
        %v714 = vshrl.u32 %v713, 7
        %v715 = vsub.s32 %v712, %v714
        %v716 = vrot.slane %v688, %v715
        %v717 = vcombine.high %v695, %v695
        %v718 = vcombine.high %v702, %v702
        %v719 = vcombine.high %v709, %v709
        %v720 = vcombine.high %v716, %v716
        %v721 = vlaneseq
        %v722 = vshrl.u32 %v721, 7
        %v723 = vsub.s32 0, %v722
        %v724 = vrot.slane %v695, %v723
        %v725 = vlaneseq
        %v726 = vshrl.u32 %v725, 7
        %v727 = vsub.s32 0, %v726
        %v728 = vrot.slane %v709, %v727
        %v729 = vlaneseq
        %v730 = vshrl.u32 %v729, 7
        %v731 = vsub.s32 0, %v730
        %v732 = vrot.slane %v717, %v731
        %v733 = vlaneseq
        %v734 = vshrl.u32 %v733, 7
        %v735 = vsub.s32 0, %v734
        %v736 = vrot.slane %v719, %v735
        %v737 = vlaneseq
        %v738 = vshrl.u32 %v737, 7
        %v739 = vsub.s32 0, %v738
        %v740 = vrot.slane %v702, %v739
        %v741 = vlaneseq
        %v742 = vshrl.u32 %v741, 7
        %v743 = vsub.s32 0, %v742
        %v744 = vrot.slane %v716, %v743
        %v745 = vlaneseq
        %v746 = vshrl.u32 %v745, 7
        %v747 = vsub.s32 0, %v746
        %v748 = vrot.slane %v718, %v747
        %v749 = vlaneseq
        %v750 = vshrl.u32 %v749, 7
        %v751 = vsub.s32 0, %v750
        %v752 = vrot.slane %v720, %v751
        %v761 = vmul.f32 %v724, %v662
        %v762 = vmul.f32 %v724, %v663
        %v763 = vmul.f32 %v728, %v662
        %v764 = vmul.f32 %v728, %v663
        %v765 = vmul.f32 %v732, %v662
        %v766 = vmul.f32 %v732, %v663
        %v767 = vmul.f32 %v736, %v662
        %v768 = vmul.f32 %v736, %v663
        %v769 = vmul.f32 %v740, %v662
        %v770 = vmul.f32 %v740, %v663
        %v771 = vmul.f32 %v744, %v662
        %v772 = vmul.f32 %v744, %v663
        %v773 = vmul.f32 %v748, %v662
        %v774 = vmul.f32 %v748, %v663
        %v775 = vmul.f32 %v752, %v662
        %v776 = vmul.f32 %v752, %v663
        %v777 = vmul.f32 %v761, 1.442695
        %v778 = vpow.pop %v777
        %v779 = vmul.f32 %v762, 1.442695
        %v780 = vpow.pop %v779
        %v781 = vmul.f32 %v763, 1.442695
        %v782 = vpow.pop %v781
        %v783 = vmul.f32 %v764, 1.442695
        %v784 = vpow.pop %v783
        %v785 = vmul.f32 %v765, 1.442695
        %v786 = vpow.pop %v785
        %v787 = vmul.f32 %v766, 1.442695
        %v788 = vpow.pop %v787
        %v789 = vmul.f32 %v767, 1.442695
        %v790 = vpow.pop %v789
        %v791 = vmul.f32 %v768, 1.442695
        %v792 = vpow.pop %v791
        %v793 = vmul.f32 %v769, 1.442695
        %v794 = vpow.pop %v793
        %v795 = vmul.f32 %v770, 1.442695
        %v796 = vpow.pop %v795
        %v797 = vmul.f32 %v771, 1.442695
        %v798 = vpow.pop %v797
        %v799 = vmul.f32 %v772, 1.442695
        %v800 = vpow.pop %v799
        %v801 = vmul.f32 %v773, 1.442695
        %v802 = vpow.pop %v801
        %v803 = vmul.f32 %v774, 1.442695
        %v804 = vpow.pop %v803
        %v805 = vmul.f32 %v775, 1.442695
        %v806 = vpow.pop %v805
        %v807 = vmul.f32 %v776, 1.442695
        %v808 = vpow.pop %v807
        %809 = vst.msk [vmem:[#allocation2] sm:$0xff] %vm540, %v778
        %810 = vst.msk [vmem:[#allocation2 + $0x8] sm:$0xff] %vm540, %v780
        %811 = vst.msk [vmem:[#allocation2 + $0x10] sm:$0xff] %vm540, %v782
        %812 = vst.msk [vmem:[#allocation2 + $0x18] sm:$0xff] %vm540, %v784
        %813 = vst.msk [vmem:[#allocation2 + $0x20] sm:$0xff] %vm540, %v786
        %814 = vst.msk [vmem:[#allocation2 + $0x28] sm:$0xff] %vm540, %v788
        %815 = vst.msk [vmem:[#allocation2 + $0x30] sm:$0xff] %vm540, %v790
        %816 = vst.msk [vmem:[#allocation2 + $0x38] sm:$0xff] %vm540, %v792
        %817 = vst.msk [vmem:[#allocation2 + $0x40] sm:$0xff] %vm540, %v794
        %818 = vst.msk [vmem:[#allocation2 + $0x48] sm:$0xff] %vm540, %v796
        %819 = vst.msk [vmem:[#allocation2 + $0x50] sm:$0xff] %vm540, %v798
        %820 = vst.msk [vmem:[#allocation2 + $0x58] sm:$0xff] %vm540, %v800
        %821 = vst.msk [vmem:[#allocation2 + $0x60] sm:$0xff] %vm540, %v802
        %822 = vst.msk [vmem:[#allocation2 + $0x68] sm:$0xff] %vm540, %v804
        %823 = vst.msk [vmem:[#allocation2 + $0x70] sm:$0xff] %vm540, %v806
        %824 = vst.msk [vmem:[#allocation2 + $0x78] sm:$0xff] %vm540, %v808
        %v826 = vcombine.high %v670, %v670
        %v828 = vunpack.c.l.s4 1966171168
        %v829 = vunpack.c.0.s8 %v828
        %v830 = vlaneseq
        %v831 = vshrl.u32 %v830, 7
        %v832 = vsub.s32 %v829, %v831
        %v833 = vrot.slane %v670, %v832
        %v835 = vunpack.c.l.s4 1966171168
        %v836 = vunpack.c.0.s8 %v835
        %v837 = vlaneseq
        %v838 = vshrl.u32 %v837, 7
        %v839 = vsub.s32 %v836, %v838
        %v840 = vrot.slane %v826, %v839
        %v841 = vcombine.high %v833, %v833
        %v842 = vcombine.high %v840, %v840
        %v844 = vunpack.c.l.s4 1966171168
        %v845 = vunpack.c.0.s8 %v844
        %v846 = vlaneseq
        %v847 = vshrl.u32 %v846, 7
        %v848 = vsub.s32 %v845, %v847
        %v849 = vrot.slane %v833, %v848
        %v851 = vunpack.c.l.s4 1966171168
        %v852 = vunpack.c.0.s8 %v851
        %v853 = vlaneseq
        %v854 = vshrl.u32 %v853, 7
        %v855 = vsub.s32 %v852, %v854
        %v856 = vrot.slane %v840, %v855
        %v858 = vunpack.c.l.s4 1966171168
        %v859 = vunpack.c.0.s8 %v858
        %v860 = vlaneseq
        %v861 = vshrl.u32 %v860, 7
        %v862 = vsub.s32 %v859, %v861
        %v863 = vrot.slane %v841, %v862
        %v865 = vunpack.c.l.s4 1966171168
        %v866 = vunpack.c.0.s8 %v865
        %v867 = vlaneseq
        %v868 = vshrl.u32 %v867, 7
        %v869 = vsub.s32 %v866, %v868
        %v870 = vrot.slane %v842, %v869
        %v871 = vcombine.high %v849, %v849
        %v872 = vcombine.high %v856, %v856
        %v873 = vcombine.high %v863, %v863
        %v874 = vcombine.high %v870, %v870
        %v875 = vlaneseq
        %v876 = vshrl.u32 %v875, 7
        %v877 = vsub.s32 0, %v876
        %v878 = vrot.slane %v579, %v877
        %s880 = sor.u32 256, 16
        %881 = vbcast.lane.b32.xlu0 %v878, %s880
        %v882 = vpop.permute.xlu0 %881
        %s884 = sor.u32 256, 24
        %885 = vbcast.lane.b32.xlu0 %v878, %s884
        %v886 = vpop.permute.xlu0 %885
        %v887 = vlaneseq
        %v888 = vshrl.u32 %v887, 7
        %v889 = vsub.s32 1, %v888
        %v890 = vrot.slane %v579, %v889
        %s892 = sor.u32 256, 16
        %893 = vbcast.lane.b32.xlu0 %v890, %s892
        %v894 = vpop.permute.xlu0 %893
        %s896 = sor.u32 256, 24
        %897 = vbcast.lane.b32.xlu0 %v890, %s896
        %v898 = vpop.permute.xlu0 %897
        %v899 = vlaneseq
        %v900 = vshrl.u32 %v899, 7
        %v901 = vsub.s32 2, %v900
        %v902 = vrot.slane %v579, %v901
        %s904 = sor.u32 256, 16
        %905 = vbcast.lane.b32.xlu0 %v902, %s904
        %v906 = vpop.permute.xlu0 %905
        %s908 = sor.u32 256, 24
        %909 = vbcast.lane.b32.xlu0 %v902, %s908
        %v910 = vpop.permute.xlu0 %909
        %v911 = vlaneseq
        %v912 = vshrl.u32 %v911, 7
        %v913 = vsub.s32 3, %v912
        %v914 = vrot.slane %v579, %v913
        %s916 = sor.u32 256, 16
        %917 = vbcast.lane.b32.xlu0 %v914, %s916
        %v918 = vpop.permute.xlu0 %917
        %s920 = sor.u32 256, 24
        %921 = vbcast.lane.b32.xlu0 %v914, %s920
        %v922 = vpop.permute.xlu0 %921
        %v923 = vlaneseq
        %v924 = vshrl.u32 %v923, 7
        %v925 = vsub.s32 4, %v924
        %v926 = vrot.slane %v579, %v925
        %s928 = sor.u32 256, 16
        %929 = vbcast.lane.b32.xlu0 %v926, %s928
        %v930 = vpop.permute.xlu0 %929
        %s932 = sor.u32 256, 24
        %933 = vbcast.lane.b32.xlu0 %v926, %s932
        %v934 = vpop.permute.xlu0 %933
        %v935 = vlaneseq
        %v936 = vshrl.u32 %v935, 7
        %v937 = vsub.s32 5, %v936
        %v938 = vrot.slane %v579, %v937
        %s940 = sor.u32 256, 16
        %941 = vbcast.lane.b32.xlu0 %v938, %s940
        %v942 = vpop.permute.xlu0 %941
        %s944 = sor.u32 256, 24
        %945 = vbcast.lane.b32.xlu0 %v938, %s944
        %v946 = vpop.permute.xlu0 %945
        %v947 = vlaneseq
        %v948 = vshrl.u32 %v947, 7
        %v949 = vsub.s32 6, %v948
        %v950 = vrot.slane %v579, %v949
        %s952 = sor.u32 256, 16
        %953 = vbcast.lane.b32.xlu0 %v950, %s952
        %v954 = vpop.permute.xlu0 %953
        %s956 = sor.u32 256, 24
        %957 = vbcast.lane.b32.xlu0 %v950, %s956
        %v958 = vpop.permute.xlu0 %957
        %v959 = vlaneseq
        %v960 = vshrl.u32 %v959, 7
        %v961 = vsub.s32 7, %v960
        %v962 = vrot.slane %v579, %v961
        %s964 = sor.u32 256, 16
        %965 = vbcast.lane.b32.xlu0 %v962, %s964
        %v966 = vpop.permute.xlu0 %965
        %s968 = sor.u32 256, 24
        %969 = vbcast.lane.b32.xlu0 %v962, %s968
        %v970 = vpop.permute.xlu0 %969
        %v971 = vlaneseq
        %v972 = vshrl.u32 %v971, 7
        %v973 = vsub.s32 0, %v972
        %v974 = vrot.slane %v849, %v973
        %v975 = vlaneseq
        %v976 = vshrl.u32 %v975, 7
        %v977 = vsub.s32 0, %v976
        %v978 = vrot.slane %v863, %v977
        %v979 = vlaneseq
        %v980 = vshrl.u32 %v979, 7
        %v981 = vsub.s32 0, %v980
        %v982 = vrot.slane %v871, %v981
        %v983 = vlaneseq
        %v984 = vshrl.u32 %v983, 7
        %v985 = vsub.s32 0, %v984
        %v986 = vrot.slane %v873, %v985
        %v987 = vlaneseq
        %v988 = vshrl.u32 %v987, 7
        %v989 = vsub.s32 0, %v988
        %v990 = vrot.slane %v856, %v989
        %v991 = vlaneseq
        %v992 = vshrl.u32 %v991, 7
        %v993 = vsub.s32 0, %v992
        %v994 = vrot.slane %v870, %v993
        %v995 = vlaneseq
        %v996 = vshrl.u32 %v995, 7
        %v997 = vsub.s32 0, %v996
        %v998 = vrot.slane %v872, %v997
        %v999 = vlaneseq
        %v1000 = vshrl.u32 %v999, 7
        %v1001 = vsub.s32 0, %v1000
        %v1002 = vrot.slane %v874, %v1001
        %v1011 = vmul.f32 %v974, %v882
        %v1012 = vmul.f32 %v974, %v886
        %v1013 = vmul.f32 %v978, %v894
        %v1014 = vmul.f32 %v978, %v898
        %v1015 = vmul.f32 %v982, %v906
        %v1016 = vmul.f32 %v982, %v910
        %v1017 = vmul.f32 %v986, %v918
        %v1018 = vmul.f32 %v986, %v922
        %v1019 = vmul.f32 %v990, %v930
        %v1020 = vmul.f32 %v990, %v934
        %v1021 = vmul.f32 %v994, %v942
        %v1022 = vmul.f32 %v994, %v946
        %v1023 = vmul.f32 %v998, %v954
        %v1024 = vmul.f32 %v998, %v958
        %v1025 = vmul.f32 %v1002, %v966
        %v1026 = vmul.f32 %v1002, %v970
        %v1027 = vmul.f32 %v1011, %v664
        %v1028 = vmul.f32 %v1012, %v665
        %v1029 = vmul.f32 %v1013, %v664
        %v1030 = vmul.f32 %v1014, %v665
        %v1031 = vmul.f32 %v1015, %v664
        %v1032 = vmul.f32 %v1016, %v665
        %v1033 = vmul.f32 %v1017, %v664
        %v1034 = vmul.f32 %v1018, %v665
        %v1035 = vmul.f32 %v1019, %v664
        %v1036 = vmul.f32 %v1020, %v665
        %v1037 = vmul.f32 %v1021, %v664
        %v1038 = vmul.f32 %v1022, %v665
        %v1039 = vmul.f32 %v1023, %v664
        %v1040 = vmul.f32 %v1024, %v665
        %v1041 = vmul.f32 %v1025, %v664
        %v1042 = vmul.f32 %v1026, %v665
        %1043 = vst.msk [vmem:[#allocation3] sm:$0xff] %vm540, %v1027
        %1044 = vst.msk [vmem:[#allocation3 + $0x8] sm:$0xff] %vm540, %v1028
        %1045 = vst.msk [vmem:[#allocation3 + $0x10] sm:$0xff] %vm540, %v1029
        %1046 = vst.msk [vmem:[#allocation3 + $0x18] sm:$0xff] %vm540, %v1030
        %1047 = vst.msk [vmem:[#allocation3 + $0x20] sm:$0xff] %vm540, %v1031
        %1048 = vst.msk [vmem:[#allocation3 + $0x28] sm:$0xff] %vm540, %v1032
        %1049 = vst.msk [vmem:[#allocation3 + $0x30] sm:$0xff] %vm540, %v1033
        %1050 = vst.msk [vmem:[#allocation3 + $0x38] sm:$0xff] %vm540, %v1034
        %1051 = vst.msk [vmem:[#allocation3 + $0x40] sm:$0xff] %vm540, %v1035
        %1052 = vst.msk [vmem:[#allocation3 + $0x48] sm:$0xff] %vm540, %v1036
        %1053 = vst.msk [vmem:[#allocation3 + $0x50] sm:$0xff] %vm540, %v1037
        %1054 = vst.msk [vmem:[#allocation3 + $0x58] sm:$0xff] %vm540, %v1038
        %1055 = vst.msk [vmem:[#allocation3 + $0x60] sm:$0xff] %vm540, %v1039
        %1056 = vst.msk [vmem:[#allocation3 + $0x68] sm:$0xff] %vm540, %v1040
        %1057 = vst.msk [vmem:[#allocation3 + $0x70] sm:$0xff] %vm540, %v1041
        %1058 = vst.msk [vmem:[#allocation3 + $0x78] sm:$0xff] %vm540, %v1042
        %v1059 = vld [vmem:[#allocation2] sm:$0xff]
        %v1060 = vld [vmem:[#allocation2 + $0x8] sm:$0xff]
        %v1061 = vmul.f32 %v1059, 0.0
        %v1062 = vmul.f32 %v1060, 0.0
        %v1063 = vld [vmem:[#allocation3] sm:$0xff]
        %v1064 = vld [vmem:[#allocation3 + $0x8] sm:$0xff]
        %v1065 = vadd.f32 %v1061, %v1063
        %v1066 = vadd.f32 %v1062, %v1064
        %1067 = vst.msk [vmem:[#allocation4] sm:$0xff] %vm540, %v1065
        %1068 = vst.msk [vmem:[#allocation4 + $0x8] sm:$0xff] %vm540, %v1066
        %s1069 = scalar_lea.vmem [#allocation2], 16
        %v1070 = vld [vmem:[%s1069] sm:$0xff]
        %v1071 = vld [vmem:[%s1069 + $0x8] sm:$0xff]
        %v1072 = vmul.f32 %v1070, %v1065
        %v1073 = vmul.f32 %v1071, %v1066
        %s1074 = scalar_lea.vmem [#allocation3], 16
        %v1075 = vld [vmem:[%s1074] sm:$0xff]
        %v1076 = vld [vmem:[%s1074 + $0x8] sm:$0xff]
        %v1077 = vadd.f32 %v1072, %v1075
        %v1078 = vadd.f32 %v1073, %v1076
        %s1079 = scalar_lea.vmem [#allocation4], 16
        %1080 = vst.msk [vmem:[%s1079] sm:$0xff] %vm540, %v1077
        %1081 = vst.msk [vmem:[%s1079 + $0x8] sm:$0xff] %vm540, %v1078
        %s1082 = scalar_lea.vmem [#allocation2], 32
        %v1083 = vld [vmem:[%s1082] sm:$0xff]
        %v1084 = vld [vmem:[%s1082 + $0x8] sm:$0xff]
        %v1085 = vmul.f32 %v1083, %v1077
        %v1086 = vmul.f32 %v1084, %v1078
        %s1087 = scalar_lea.vmem [#allocation3], 32
        %v1088 = vld [vmem:[%s1087] sm:$0xff]
        %v1089 = vld [vmem:[%s1087 + $0x8] sm:$0xff]
        %v1090 = vadd.f32 %v1085, %v1088
        %v1091 = vadd.f32 %v1086, %v1089
        %s1092 = scalar_lea.vmem [#allocation4], 32
        %1093 = vst.msk [vmem:[%s1092] sm:$0xff] %vm540, %v1090
        %1094 = vst.msk [vmem:[%s1092 + $0x8] sm:$0xff] %vm540, %v1091
        %s1095 = scalar_lea.vmem [#allocation2], 48
        %v1096 = vld [vmem:[%s1095] sm:$0xff]
        %v1097 = vld [vmem:[%s1095 + $0x8] sm:$0xff]
        %v1098 = vmul.f32 %v1096, %v1090
        %v1099 = vmul.f32 %v1097, %v1091
        %s1100 = scalar_lea.vmem [#allocation3], 48
        %v1101 = vld [vmem:[%s1100] sm:$0xff]
        %v1102 = vld [vmem:[%s1100 + $0x8] sm:$0xff]
        %v1103 = vadd.f32 %v1098, %v1101
        %v1104 = vadd.f32 %v1099, %v1102
        %s1105 = scalar_lea.vmem [#allocation4], 48
        %1106 = vst.msk [vmem:[%s1105] sm:$0xff] %vm540, %v1103
        %1107 = vst.msk [vmem:[%s1105 + $0x8] sm:$0xff] %vm540, %v1104
        %s1108 = scalar_lea.vmem [#allocation2], 64
        %v1109 = vld [vmem:[%s1108] sm:$0xff]
        %v1110 = vld [vmem:[%s1108 + $0x8] sm:$0xff]
        %v1111 = vmul.f32 %v1109, %v1103
        %v1112 = vmul.f32 %v1110, %v1104
        %s1113 = scalar_lea.vmem [#allocation3], 64
        %v1114 = vld [vmem:[%s1113] sm:$0xff]
        %v1115 = vld [vmem:[%s1113 + $0x8] sm:$0xff]
        %v1116 = vadd.f32 %v1111, %v1114
        %v1117 = vadd.f32 %v1112, %v1115
        %s1118 = scalar_lea.vmem [#allocation4], 64
        %1119 = vst.msk [vmem:[%s1118] sm:$0xff] %vm540, %v1116
        %1120 = vst.msk [vmem:[%s1118 + $0x8] sm:$0xff] %vm540, %v1117
        %s1121 = scalar_lea.vmem [#allocation2], 80
        %v1122 = vld [vmem:[%s1121] sm:$0xff]
        %v1123 = vld [vmem:[%s1121 + $0x8] sm:$0xff]
        %v1124 = vmul.f32 %v1122, %v1116
        %v1125 = vmul.f32 %v1123, %v1117
        %s1126 = scalar_lea.vmem [#allocation3], 80
        %v1127 = vld [vmem:[%s1126] sm:$0xff]
        %v1128 = vld [vmem:[%s1126 + $0x8] sm:$0xff]
        %v1129 = vadd.f32 %v1124, %v1127
        %v1130 = vadd.f32 %v1125, %v1128
        %s1131 = scalar_lea.vmem [#allocation4], 80
        %1132 = vst.msk [vmem:[%s1131] sm:$0xff] %vm540, %v1129
        %1133 = vst.msk [vmem:[%s1131 + $0x8] sm:$0xff] %vm540, %v1130
        %s1134 = scalar_lea.vmem [#allocation2], 96
        %v1135 = vld [vmem:[%s1134] sm:$0xff]
        %v1136 = vld [vmem:[%s1134 + $0x8] sm:$0xff]
        %v1137 = vmul.f32 %v1135, %v1129
        %v1138 = vmul.f32 %v1136, %v1130
        %s1139 = scalar_lea.vmem [#allocation3], 96
        %v1140 = vld [vmem:[%s1139] sm:$0xff]
        %v1141 = vld [vmem:[%s1139 + $0x8] sm:$0xff]
        %v1142 = vadd.f32 %v1137, %v1140
        %v1143 = vadd.f32 %v1138, %v1141
        %s1144 = scalar_lea.vmem [#allocation4], 96
        %1145 = vst.msk [vmem:[%s1144] sm:$0xff] %vm540, %v1142
        %1146 = vst.msk [vmem:[%s1144 + $0x8] sm:$0xff] %vm540, %v1143
        %s1147 = scalar_lea.vmem [#allocation2], 112
        %v1148 = vld [vmem:[%s1147] sm:$0xff]
        %v1149 = vld [vmem:[%s1147 + $0x8] sm:$0xff]
        %v1150 = vmul.f32 %v1148, %v1142
        %v1151 = vmul.f32 %v1149, %v1143
        %s1152 = scalar_lea.vmem [#allocation3], 112
        %v1153 = vld [vmem:[%s1152] sm:$0xff]
        %v1154 = vld [vmem:[%s1152 + $0x8] sm:$0xff]
        %v1155 = vadd.f32 %v1150, %v1153
        %v1156 = vadd.f32 %v1151, %v1154
        %s1157 = scalar_lea.vmem [#allocation4], 112
        %1158 = vst.msk [vmem:[%s1157] sm:$0xff] %vm540, %v1155
        %1159 = vst.msk [vmem:[%s1157 + $0x8] sm:$0xff] %vm540, %v1156
        %v1160 = vld [vmem:[#allocation4] sm:$0xff]
        %v1161 = vld [vmem:[#allocation4 + $0x8] sm:$0xff]
        %v1162 = vld [vmem:[#allocation4 + $0x10] sm:$0xff]
        %v1163 = vld [vmem:[#allocation4 + $0x18] sm:$0xff]
        %v1164 = vld [vmem:[#allocation4 + $0x20] sm:$0xff]
        %v1165 = vld [vmem:[#allocation4 + $0x28] sm:$0xff]
        %v1166 = vld [vmem:[#allocation4 + $0x30] sm:$0xff]
        %v1167 = vld [vmem:[#allocation4 + $0x38] sm:$0xff]
        %v1168 = vld [vmem:[#allocation4 + $0x40] sm:$0xff]
        %v1169 = vld [vmem:[#allocation4 + $0x48] sm:$0xff]
        %v1170 = vld [vmem:[#allocation4 + $0x50] sm:$0xff]
        %v1171 = vld [vmem:[#allocation4 + $0x58] sm:$0xff]
        %v1172 = vld [vmem:[#allocation4 + $0x60] sm:$0xff]
        %v1173 = vld [vmem:[#allocation4 + $0x68] sm:$0xff]
        %v1174 = vld [vmem:[#allocation4 + $0x70] sm:$0xff]
        %v1175 = vld [vmem:[#allocation4 + $0x78] sm:$0xff]
        %s1177 = sor.u32 256, 32
        %1178 = vbcast.lane.b32.xlu0 %v878, %s1177
        %v1179 = vpop.permute.xlu0 %1178
        %s1181 = sor.u32 256, 40
        %1182 = vbcast.lane.b32.xlu0 %v878, %s1181
        %v1183 = vpop.permute.xlu0 %1182
        %s1185 = sor.u32 256, 32
        %1186 = vbcast.lane.b32.xlu0 %v890, %s1185
        %v1187 = vpop.permute.xlu0 %1186
        %s1189 = sor.u32 256, 40
        %1190 = vbcast.lane.b32.xlu0 %v890, %s1189
        %v1191 = vpop.permute.xlu0 %1190
        %s1193 = sor.u32 256, 32
        %1194 = vbcast.lane.b32.xlu0 %v902, %s1193
        %v1195 = vpop.permute.xlu0 %1194
        %s1197 = sor.u32 256, 40
        %1198 = vbcast.lane.b32.xlu0 %v902, %s1197
        %v1199 = vpop.permute.xlu0 %1198
        %s1201 = sor.u32 256, 32
        %1202 = vbcast.lane.b32.xlu0 %v914, %s1201
        %v1203 = vpop.permute.xlu0 %1202
        %s1205 = sor.u32 256, 40
        %1206 = vbcast.lane.b32.xlu0 %v914, %s1205
        %v1207 = vpop.permute.xlu0 %1206
        %s1209 = sor.u32 256, 32
        %1210 = vbcast.lane.b32.xlu0 %v926, %s1209
        %v1211 = vpop.permute.xlu0 %1210
        %s1213 = sor.u32 256, 40
        %1214 = vbcast.lane.b32.xlu0 %v926, %s1213
        %v1215 = vpop.permute.xlu0 %1214
        %s1217 = sor.u32 256, 32
        %1218 = vbcast.lane.b32.xlu0 %v938, %s1217
        %v1219 = vpop.permute.xlu0 %1218
        %s1221 = sor.u32 256, 40
        %1222 = vbcast.lane.b32.xlu0 %v938, %s1221
        %v1223 = vpop.permute.xlu0 %1222
        %s1225 = sor.u32 256, 32
        %1226 = vbcast.lane.b32.xlu0 %v950, %s1225
        %v1227 = vpop.permute.xlu0 %1226
        %s1229 = sor.u32 256, 40
        %1230 = vbcast.lane.b32.xlu0 %v950, %s1229
        %v1231 = vpop.permute.xlu0 %1230
        %s1233 = sor.u32 256, 32
        %1234 = vbcast.lane.b32.xlu0 %v962, %s1233
        %v1235 = vpop.permute.xlu0 %1234
        %s1237 = sor.u32 256, 40
        %1238 = vbcast.lane.b32.xlu0 %v962, %s1237
        %v1239 = vpop.permute.xlu0 %1238
        %v1240 = vmul.f32 %v1160, %v1179
        %v1241 = vmul.f32 %v1161, %v1183
        %v1242 = vmul.f32 %v1162, %v1187
        %v1243 = vmul.f32 %v1163, %v1191
        %v1244 = vmul.f32 %v1164, %v1195
        %v1245 = vmul.f32 %v1165, %v1199
        %v1246 = vmul.f32 %v1166, %v1203
        %v1247 = vmul.f32 %v1167, %v1207
        %v1248 = vmul.f32 %v1168, %v1211
        %v1249 = vmul.f32 %v1169, %v1215
        %v1250 = vmul.f32 %v1170, %v1219
        %v1251 = vmul.f32 %v1171, %v1223
        %v1252 = vmul.f32 %v1172, %v1227
        %v1253 = vmul.f32 %v1173, %v1231
        %v1254 = vmul.f32 %v1174, %v1235
        %v1255 = vmul.f32 %v1175, %v1239
        %v1256 = vsel %vm540, %v1240, 0.0
        %v1257 = vsel %vm540, %v1241, 0.0
        %v1258 = vadd.f32 %v1256, %v1257
        %v1259 = vrot.slane %v1258, 4
        %v1260 = vadd.f32 %v1258, %v1259
        %v1261 = vrot.slane %v1260, 2
        %v1262 = vadd.f32 %v1260, %v1261
        %v1263 = vrot.slane %v1262, 1
        %v1264 = vadd.f32 %v1262, %v1263
        %v1265 = vsel %vm540, %v1242, 0.0
        %v1266 = vsel %vm540, %v1243, 0.0
        %v1267 = vadd.f32 %v1265, %v1266
        %v1268 = vrot.slane %v1267, 4
        %v1269 = vadd.f32 %v1267, %v1268
        %v1270 = vrot.slane %v1269, 2
        %v1271 = vadd.f32 %v1269, %v1270
        %v1272 = vrot.slane %v1271, 1
        %v1273 = vadd.f32 %v1271, %v1272
        %v1274 = vsel %vm540, %v1244, 0.0
        %v1275 = vsel %vm540, %v1245, 0.0
        %v1276 = vadd.f32 %v1274, %v1275
        %v1277 = vrot.slane %v1276, 4
        %v1278 = vadd.f32 %v1276, %v1277
        %v1279 = vrot.slane %v1278, 2
        %v1280 = vadd.f32 %v1278, %v1279
        %v1281 = vrot.slane %v1280, 1
        %v1282 = vadd.f32 %v1280, %v1281
        %v1283 = vsel %vm540, %v1246, 0.0
        %v1284 = vsel %vm540, %v1247, 0.0
        %v1285 = vadd.f32 %v1283, %v1284
        %v1286 = vrot.slane %v1285, 4
        %v1287 = vadd.f32 %v1285, %v1286
        %v1288 = vrot.slane %v1287, 2
        %v1289 = vadd.f32 %v1287, %v1288
        %v1290 = vrot.slane %v1289, 1
        %v1291 = vadd.f32 %v1289, %v1290
        %v1292 = vsel %vm540, %v1248, 0.0
        %v1293 = vsel %vm540, %v1249, 0.0
        %v1294 = vadd.f32 %v1292, %v1293
        %v1295 = vrot.slane %v1294, 4
        %v1296 = vadd.f32 %v1294, %v1295
        %v1297 = vrot.slane %v1296, 2
        %v1298 = vadd.f32 %v1296, %v1297
        %v1299 = vrot.slane %v1298, 1
        %v1300 = vadd.f32 %v1298, %v1299
        %v1301 = vsel %vm540, %v1250, 0.0
        %v1302 = vsel %vm540, %v1251, 0.0
        %v1303 = vadd.f32 %v1301, %v1302
        %v1304 = vrot.slane %v1303, 4
        %v1305 = vadd.f32 %v1303, %v1304
        %v1306 = vrot.slane %v1305, 2
        %v1307 = vadd.f32 %v1305, %v1306
        %v1308 = vrot.slane %v1307, 1
        %v1309 = vadd.f32 %v1307, %v1308
        %v1310 = vsel %vm540, %v1252, 0.0
        %v1311 = vsel %vm540, %v1253, 0.0
        %v1312 = vadd.f32 %v1310, %v1311
        %v1313 = vrot.slane %v1312, 4
        %v1314 = vadd.f32 %v1312, %v1313
        %v1315 = vrot.slane %v1314, 2
        %v1316 = vadd.f32 %v1314, %v1315
        %v1317 = vrot.slane %v1316, 1
        %v1318 = vadd.f32 %v1316, %v1317
        %v1319 = vsel %vm540, %v1254, 0.0
        %v1320 = vsel %vm540, %v1255, 0.0
        %v1321 = vadd.f32 %v1319, %v1320
        %v1322 = vrot.slane %v1321, 4
        %v1323 = vadd.f32 %v1321, %v1322
        %v1324 = vrot.slane %v1323, 2
        %v1325 = vadd.f32 %v1323, %v1324
        %v1326 = vrot.slane %v1325, 1
        %v1327 = vadd.f32 %v1325, %v1326
        %v1328 = vld [vmem:[%s9] sm:$0x1]
        %v1330 = vlaneseq
        %v1331 = vshrl.u32 %v1330, 7
        %v1332 = vsub.s32 0, %v1331
        %v1333 = vrot.slane %v1328, %v1332
        %1334 = vrot.lane.b32.xlu0 %v1333, 32
        %v1335 = vpop.permute.xlu0 %1334
        %v1337 = vmul.f32 %v503, %v1335
        %v1339 = vrot.slane %v1337, 1
        %v1340 = vrot.slane %v1337, 2
        %v1341 = vrot.slane %v1337, 3
        %v1342 = vrot.slane %v1337, 4
        %v1343 = vrot.slane %v1337, 5
        %v1344 = vrot.slane %v1337, 6
        %v1345 = vrot.slane %v1337, 7
        %1346 = vrot.lane.b32.xlu0 %v1337, 96
        %v1347 = vpop.permute.xlu0 %1346
        %1348 = vrot.lane.b32.xlu0 %v1339, 96
        %v1349 = vpop.permute.xlu0 %1348
        %1350 = vrot.lane.b32.xlu0 %v1340, 96
        %v1351 = vpop.permute.xlu0 %1350
        %1352 = vrot.lane.b32.xlu0 %v1341, 96
        %v1353 = vpop.permute.xlu0 %1352
        %1354 = vrot.lane.b32.xlu0 %v1342, 96
        %v1355 = vpop.permute.xlu0 %1354
        %1356 = vrot.lane.b32.xlu0 %v1343, 96
        %v1357 = vpop.permute.xlu0 %1356
        %1358 = vrot.lane.b32.xlu0 %v1344, 96
        %v1359 = vpop.permute.xlu0 %1358
        %1360 = vrot.lane.b32.xlu0 %v1345, 96
        %v1361 = vpop.permute.xlu0 %1360
        %v1370 = vadd.f32 %v1264, %v1347
        %v1371 = vadd.f32 %v1273, %v1349
        %v1372 = vadd.f32 %v1282, %v1351
        %v1373 = vadd.f32 %v1291, %v1353
        %v1374 = vadd.f32 %v1300, %v1355
        %v1375 = vadd.f32 %v1309, %v1357
        %v1376 = vadd.f32 %v1318, %v1359
        %v1377 = vadd.f32 %v1327, %v1361
        %1386 = vrot.lane.b32.xlu0 %v1370, 96
        %v1387 = vpop.permute.xlu0 %1386
        %1388 = vrot.lane.b32.xlu0 %v1371, 96
        %v1389 = vpop.permute.xlu0 %1388
        %1390 = vrot.lane.b32.xlu0 %v1372, 96
        %v1391 = vpop.permute.xlu0 %1390
        %1392 = vrot.lane.b32.xlu0 %v1373, 96
        %v1393 = vpop.permute.xlu0 %1392
        %1394 = vrot.lane.b32.xlu0 %v1374, 96
        %v1395 = vpop.permute.xlu0 %1394
        %1396 = vrot.lane.b32.xlu0 %v1375, 96
        %v1397 = vpop.permute.xlu0 %1396
        %1398 = vrot.lane.b32.xlu0 %v1376, 96
        %v1399 = vpop.permute.xlu0 %1398
        %1400 = vrot.lane.b32.xlu0 %v1377, 96
        %v1401 = vpop.permute.xlu0 %1400
        %v1410 = vadd.f32 %v1370, %v1387
        %v1411 = vadd.f32 %v1371, %v1389
        %v1412 = vadd.f32 %v1372, %v1391
        %v1413 = vadd.f32 %v1373, %v1393
        %v1414 = vadd.f32 %v1374, %v1395
        %v1415 = vadd.f32 %v1375, %v1397
        %v1416 = vadd.f32 %v1376, %v1399
        %v1417 = vadd.f32 %v1377, %v1401
        %v1419 = vrot.slane %v485, 1
        %v1420 = vrot.slane %v485, 2
        %v1421 = vrot.slane %v485, 3
        %v1422 = vrot.slane %v485, 4
        %v1423 = vrot.slane %v485, 5
        %v1424 = vrot.slane %v485, 6
        %v1425 = vrot.slane %v485, 7
        %v1434 = vmul.f32 %v1410, %v485
        %v1435 = vmul.f32 %v1411, %v1419
        %v1436 = vmul.f32 %v1412, %v1420
        %v1437 = vmul.f32 %v1413, %v1421
        %v1438 = vmul.f32 %v1414, %v1422
        %v1439 = vmul.f32 %v1415, %v1423
        %v1440 = vmul.f32 %v1416, %v1424
        %v1441 = vmul.f32 %v1417, %v1425
        %v1450 = vrot.slane %v1435, 7
        %vm1451 = vcmask 1041409
        %v1452 = vsel %vm1451, %v1450, %v1434
        %v1453 = vrot.slane %v1436, 6
        %vm1454 = vcmask 1042434
        %v1455 = vsel %vm1454, %v1453, %v1452
        %v1456 = vrot.slane %v1437, 5
        %vm1457 = vcmask 1043459
        %v1458 = vsel %vm1457, %v1456, %v1455
        %v1459 = vrot.slane %v1438, 4
        %vm1460 = vcmask 1044484
        %v1461 = vsel %vm1460, %v1459, %v1458
        %v1462 = vrot.slane %v1439, 3
        %vm1463 = vcmask 1045509
        %v1464 = vsel %vm1463, %v1462, %v1461
        %v1465 = vrot.slane %v1440, 2
        %vm1466 = vcmask 1046534
        %v1467 = vsel %vm1466, %v1465, %v1464
        %v1468 = vrot.slane %v1441, 1
        %vm1469 = vcmask 1047559
        %v1470 = vsel %vm1469, %v1468, %v1467
        %v1472 = vadd.f32 %v384, %v1470
        %1473 = vst.msk [vmem:[%s378] sm:$0xff] %vm385, %v1472
        %s1474 = sand.u32 %s249, 1
        %s1475 = scalar_lea.sflag [#allocation7], %s1474
        %s1476 = sand.u32 %s249, 1
        %s1477 = smul.addr %s1476, 8
        %s1478 = scalar_lea.vmem [#allocation10], %s1477
        // Predicated region
        $region69: #{tpu_custom_call.1} parent=59 // pred_check
          %p1479 = pneg %p259
        $region70: #{tpu_custom_call.1} parent=59 // pred_check_branch
          %1481 = sbr.rel (%p1479) target = $region72
        $region71: #{tpu_custom_call.1} parent=59 // pred_region
          %s1483 = ssub.s32 128, 128
          %1484 = vsyncadd %s1475, %s1483
          %s1485 = smul.addr %s26, 128
          %s1486 = scalar_lea.hbm %s10, %s1485
          %s1488 = sshll.u32 %s1478, 4
          %s1489 = int_to_ptr.vmem [resolvable:$true] %s1488
          %1491 = dma.vmem_to_hbm [thread:$0]  %s1489, 128, %s1486, %s1475
        $region72: #{tpu_custom_call.1} parent=59 // pred_fallthru
          _
      $region60: #{tpu_custom_call.1} parent=5 // pred_fallthru
        _
      %p1492 = scmp.le.s32.totalorder 2, %s21
      // Predicated region
      $region73: #{tpu_custom_call.1} parent=5 // pred_check
        %p1493 = pneg %p1492
      $region74: #{tpu_custom_call.1} parent=5 // pred_check_branch
        %1495 = sbr.rel (%p1493) target = $region76
      $region75: #{tpu_custom_call.1} parent=5 // pred_region
        %s1496 = ssub.s32 %s21, 2
        // Predicated region
        $region77: #{tpu_custom_call.1} parent=75 // pred_check
          %p1497 = pneg %p265
        $region78: #{tpu_custom_call.1} parent=75 // pred_check_branch
          %1499 = sbr.rel (%p1497) target = $region80
        $region79: #{tpu_custom_call.1} parent=75 // pred_region
          %s1500 = sand.u32 %s250, 1
          %s1501 = scalar_lea.sflag [#allocation7], %s1500
          %s1502 = sand.u32 %s250, 1
          %s1503 = smul.addr %s1502, 8
          %s1504 = scalar_lea.vmem [#allocation10], %s1503
          %1505 = dma.done %s1501, 128
        $region80: #{tpu_custom_call.1} parent=75 // pred_fallthru
          _
      $region76: #{tpu_custom_call.1} parent=5 // pred_fallthru
        _
    $region6: #{tpu_custom_call.1} parent=1 // loop_footer
      %s25 = sadd.s32 1, %s21
    $region7: #{tpu_custom_call.1} parent=1 // loop_footer_branch
      %20 = sbr.rel target = $region3
    $region8: #{tpu_custom_call.1} parent=1 // loop_exit
      _
    %1506 = vsyncpa [#allocation6], 1
    %s1507 = scalar_lea.sflag [#allocation6], 1
    %1508 = vsyncpa %s1507, 1
    %1509 = vsyncpa [#allocation9], 1
    %1510 = vsyncpa [#allocation7], 1
    %s1511 = scalar_lea.sflag [#allocation7], 1
    %1512 = vsyncpa %s1511, 1

</llo_original>
